<compile_context>
chip_gen: v7x
topology: tpu7x:2x2x1
jax: 0.10.0
libtpu: 0.0.40
codegen_flags: <defaults>
</compile_context>

<pallas_src>
import functools

import jax
import jax.numpy as jnp
from jax.experimental import pallas as pl
from jax.experimental.pallas import tpu as pltpu


# ----------------------------- Pallas kernel -------------------------------
def classifier_kernel(adj_ref, deg_ref, rdeg_ref, w1_ref, b1_ref, w2_ref,
                      b2_ref, wc_ref, bc_ref, out_ref, *, compute_dtype):
    """Forward for a block of G graphs; features kept transposed (H, N) so the
    node dimension N sits on lanes for every MXU matmul.

    adj_ref : (G, N, N) int8 binary in-adjacency, adj[g, src, dst]
    deg_ref : (G, 1, N) f32 in-degrees (initial node feature, lane-dense)
    rdeg_ref: (G, 1, N) f32 1/in-degree (mean-aggregate post-scale)
    w1_ref  : (H, 1)  b1_ref/b2_ref: (H, 1)  w2_ref: (H, H) (= W2^T)
    wc_ref  : (H, CP) lane-padded classifier weight, bc_ref: (1, CP)
    out_ref : (1, G, CP) f32 lane-dense logits
    """
    cdt = compute_dtype

    # int8 binary mask -> compute dtype once per grid step; reused both layers.
    adj_t = adj_ref[...].astype(cdt)                               # (G, N, N)
    deg = deg_ref[...]                                             # (G, 1, N)
    rdeg = rdeg_ref[...]                                           # (G, 1, N)
    w1 = w1_ref[...]                                               # (H, 1)
    b1 = b1_ref[...]                                               # (H, 1)
    b2 = b2_ref[...]                                               # (H, 1)

    G, _, N = adj_t.shape
    H = w1.shape[0]

    # --- GCN layer 1 (reassociated + transposed) ----------------------------
    # (A_norm @ h0) @ W1 == diag(1/deg) @ A_bin @ (h0 @ W1); in_dim == 1 makes
    # h0 @ W1 an outer product -> VPU broadcast-multiply; the only MXU work is
    # the lane-dense (H, N) @ (N, N) propagation.
    x1 = (w1[None, :, :] * deg).astype(cdt)                        # (G, H, N)
    a1 = jnp.einsum('ghk,gkn->ghn', x1, adj_t,
                    preferred_element_type=jnp.float32)            # (G, H, N)
    h1 = jnp.maximum(a1 * rdeg + b1[None], 0.0)                    # (G, H, N) f32

    # --- GCN layer 2 ---------------------------------------------------------
    # (A_norm @ h1) @ W2 == diag(1/deg) @ A_bin @ (h1 @ W2): small weight
    # matmul first, then the lane-dense propagation + exact f32 post-scale.
    w2b = jnp.broadcast_to(w2_ref[...].astype(cdt)[None], (G, H, H))
    x2 = jnp.einsum('ghk,gkn->ghn', w2b, h1.astype(cdt),
                    preferred_element_type=jnp.float32)            # (G, H, N)
    a2 = jnp.einsum('ghk,gkn->ghn', x2.astype(cdt), adj_t,
                    preferred_element_type=jnp.float32)            # (G, H, N)
    h2 = jnp.maximum(a2 * rdeg + b2[None], 0.0)                    # (G, H, N) f32

    # --- readout (dgl.mean_nodes) + classifier -------------------------------
    # TODO(synk): ragged batched graphs (padded node rows) would need per-graph
    # node counts (scalar prefetch) + a lane mask here; this layout has exactly
    # N real nodes per graph (self-loops keep in_deg >= 1).
    hg = jnp.mean(h2, axis=-1)                                     # (G, H)
    logits = jnp.dot(hg.astype(cdt), wc_ref[...].astype(cdt),
                     preferred_element_type=jnp.float32) + bc_ref[...]
    out_ref[0] = logits                                            # (G, CP)


# ---------------------- generation-aware VMEM policy ------------------------
def _tpu_vmem_policy():
    """Return (vmem_limit_bytes, num_tensorcores), conservative on unknowns."""
    vmem_cap = None
    n_cores = 1
    try:
        vmem_cap = int(pltpu.get_tpu_info().vmem_capacity_bytes)
    except Exception:
        vmem_cap = None
    kind = ""
    try:
        kind = jax.devices()[0].device_kind.lower()
    except Exception:
        kind = ""
    if "v7" in kind:
        n_cores = 2
        vmem_cap = min(vmem_cap or (64 << 20), 64 << 20)   # 64 MiB per TC
    if vmem_cap is None:
        vmem_cap = 64 << 20                                # assume smallest part
    vmem_limit = min(int(0.75 * vmem_cap), vmem_cap - (16 << 20))
    vmem_limit = max(vmem_limit, min(32 << 20, vmem_cap))
    return int(vmem_limit), n_cores


# ------------------------------ wrapper ------------------------------------
def classifier_forward(adj_bin_t, in_deg, params, *, graphs_per_block=None,
                       compute_dtype=jnp.float32):
    """adj_bin_t: (B, N, N) int8 binary adjacency, adj_bin_t[b, src, dst] = 1
    for edge src->dst (self-loops included so in_deg >= 1).
    in_deg: (B, N) in-degrees. Returns logits (B, C) f32."""
    B, N, _ = adj_bin_t.shape
    w1, b1, w2, b2, wc, bc = params
    H = w1.shape[1]
    C = wc.shape[1]
    CP = max(128, ((C + 127) // 128) * 128)          # lane-dense logits width
    cbytes = jnp.dtype(compute_dtype).itemsize

    vmem_limit, num_tc = _tpu_vmem_policy()
    if graphs_per_block is None:
        usable = int(vmem_limit * 0.7)               # leave compiler headroom
        per_graph = (2 * N * N                        # double-buffered int8 adjacency
                     + N * N * cbytes                 # upcast copy (reused both layers)
                     + 6 * H * N * 4                  # (H, N) intermediates headroom
                     + H * H * cbytes                 # per-graph W2 broadcast
                     + 4 * 8 * N * 4                  # deg/rdeg (sublane-padded) blocks
                     + 2 * CP * 4)                    # logits block
        g = max(1, min(B, (usable - (1 << 20)) // per_graph))
        # Grid-step floor only on multi-TensorCore parts (v7x megacore);
        # single-TC parts (v5e/v6e) take the biggest possible step.
        if num_tc > 1 and B >= num_tc:
            g = min(g, pl.cdiv(B, num_tc))
        graphs_per_block = int(g)
    G = int(graphs_per_block)
    # TODO(synk): for very large N (int8 slab no longer fits VMEM) switch to
    # row-tiled adjacency blocks with a second grid axis + VMEM accumulator.

    num_blocks = pl.cdiv(B, G)
    B_pad = num_blocks * G

    in_deg = in_deg.astype(jnp.float32)
    deg3 = in_deg.reshape(B, 1, N)
    rdeg3 = (1.0 / in_deg).reshape(B, 1, N)
    if B_pad != B:                                   # pad batch; sliced off below
        pad = B_pad - B
        adj_bin_t = jnp.concatenate(
            [adj_bin_t, jnp.zeros((pad, N, N), adj_bin_t.dtype)], axis=0)
        deg3 = jnp.concatenate([deg3, jnp.ones((pad, 1, N), jnp.float32)], axis=0)
        rdeg3 = jnp.concatenate([rdeg3, jnp.ones((pad, 1, N), jnp.float32)], axis=0)

    # Tiny params: transpose for the (H, N) feature layout; lane-pad classifier.
    w1_t = w1.T.astype(jnp.float32)                  # (H, 1)
    b1_t = b1.T.astype(jnp.float32)                  # (H, 1)
    w2_t = w2.T.astype(jnp.float32)                  # (H, H) == W2^T
    b2_t = b2.T.astype(jnp.float32)                  # (H, 1)
    if CP != C:
        wc_p = jnp.pad(wc.astype(jnp.float32), ((0, 0), (0, CP - C)))
        bc_p = jnp.pad(bc.astype(jnp.float32), ((0, 0), (0, CP - C)))
    else:
        wc_p, bc_p = wc.astype(jnp.float32), bc.astype(jnp.float32)

    out = pl.pallas_call(
        functools.partial(classifier_kernel, compute_dtype=compute_dtype),
        out_shape=jax.ShapeDtypeStruct((num_blocks, G, CP), jnp.float32),
        grid_spec=pltpu.PrefetchScalarGridSpec(
            num_scalar_prefetch=0,
            grid=(num_blocks,),
            in_specs=[
                pl.BlockSpec((G, N, N), lambda b: (b, 0, 0)),   # int8 adjacency
                pl.BlockSpec((G, 1, N), lambda b: (b, 0, 0)),   # in-degrees
                pl.BlockSpec((G, 1, N), lambda b: (b, 0, 0)),   # 1 / in-degrees
                pl.BlockSpec((H, 1),    lambda b: (0, 0)),      # W1^T
                pl.BlockSpec((H, 1),    lambda b: (0, 0)),      # b1^T
                pl.BlockSpec((H, H),    lambda b: (0, 0)),      # W2^T
                pl.BlockSpec((H, 1),    lambda b: (0, 0)),      # b2^T
                pl.BlockSpec((H, CP),   lambda b: (0, 0)),      # Wc (lane-padded)
                pl.BlockSpec((1, CP),   lambda b: (0, 0)),      # bc (lane-padded)
            ],
            out_specs=pl.BlockSpec((1, G, CP), lambda b: (b, 0, 0)),
        ),
        compiler_params=pltpu.CompilerParams(
            dimension_semantics=("parallel",),
            vmem_limit_bytes=int(vmem_limit)),
    )(adj_bin_t, deg3, rdeg3, w1_t, b1_t, w2_t, b2_t, wc_p, bc_p)

    return out.reshape(B_pad, CP)[:B, :C]


# --------------------- deterministic parameter init ------------------------
def init_params(key, in_dim, hidden_dim, n_classes):
    """PyTorch nn.Linear-style uniform(-1/sqrt(fan_in), 1/sqrt(fan_in))."""
    ks = jax.random.split(key, 6)

    def lin(kw, kb, fi, fo):
        bound = 1.0 / jnp.sqrt(fi)
        w = jax.random.uniform(kw, (fi, fo), jnp.float32, -bound, bound)
        b = jax.random.uniform(kb, (1, fo), jnp.float32, -bound, bound)
        return w, b

    w1, b1 = lin(ks[0], ks[1], in_dim, hidden_dim)
    w2, b2 = lin(ks[2], ks[3], hidden_dim, hidden_dim)
    wc, bc = lin(ks[4], ks[5], hidden_dim, n_classes)
    return (w1, b1, w2, b2, wc, bc)


# ------------------------- plain-JAX reference ------------------------------
def classifier_ref(adj_bin_t, in_deg, params):
    """Matches DGL semantics: mean of incoming messages (sum / in_deg),
    linear + ReLU per layer, mean_nodes readout, linear classifier."""
    w1, b1, w2, b2, wc, bc = params
    adj = jnp.transpose(adj_bin_t.astype(jnp.float32), (0, 2, 1))  # adj[b, dst, src]
    in_deg = in_deg.astype(jnp.float32)
    rdeg = (1.0 / in_deg)[..., None]                               # (B, N, 1)
    h = in_deg[..., None]                                          # (B, N, 1)
    h = jnp.einsum('bij,bjf->bif', adj, h) * rdeg                  # mean aggregate
    h = jnp.maximum(h @ w1 + b1, 0.0)
    h = jnp.einsum('bij,bjf->bif', adj, h) * rdeg
    h = jnp.maximum(h @ w2 + b2, 0.0)
    hg = jnp.mean(h, axis=1)
    return hg @ wc + bc


# --------------------------------- main -------------------------------------
if __name__ == "__main__":
    B, N = 8, 8            # 8 graphs, 8 nodes each
    IN_DIM, HIDDEN, NCLS = 1, 32, 4

    key = jax.random.PRNGKey(0)
    k_adj, k_param = jax.random.split(key)

    # Deterministic batched graph: random directed edges + self-loops, produced
    # directly in the kernel's HBM layout (int8, adj[b, src, dst]).
    rand = jax.random.uniform(k_adj, (B, N, N)) > 0.6
    eye = jnp.eye(N, dtype=bool)[None]
    adj_bin_t = jnp.logical_or(rand, eye).astype(jnp.int8)         # (B, N, N)

    in_deg = jnp.sum(adj_bin_t.astype(jnp.float32), axis=1)        # (B, N) in-degrees

    params = init_params(k_param, IN_DIM, HIDDEN, NCLS)
    ref = classifier_ref(adj_bin_t, in_deg, params)

    # f32 compute path — matches the reference up to matmul reassociation.
    out_f32 = classifier_forward(adj_bin_t, in_deg, params,
                                 compute_dtype=jnp.float32)
    out_f32 = jax.block_until_ready(out_f32)
    assert out_f32.shape == (B, NCLS)
    assert jnp.allclose(out_f32, ref, atol=2e-3, rtol=2e-3), (out_f32, ref)

    # bf16 compute path (f32 accumulation; adjacency & 1/deg stay exact).
    out_bf16 = classifier_forward(adj_bin_t, in_deg, params,
                                  compute_dtype=jnp.bfloat16)
    out_bf16 = jax.block_until_ready(out_bf16)
    assert out_bf16.shape == (B, NCLS)
    assert jnp.allclose(out_bf16, ref, atol=1e-1, rtol=1e-1), (out_bf16, ref)

    print("KERNEL_OK")
</pallas_src>

<mosaic_0001>
module attributes {stable_mosaic.version = 11 : i64} {
  func.func @classifier_kernel(%arg0: i32, %arg1: memref<8x8x8xi8, #tpu.memory_space<vmem>>, %arg2: memref<8x1x8xf32, #tpu.memory_space<vmem>>, %arg3: memref<8x1x8xf32, #tpu.memory_space<vmem>>, %arg4: memref<32x1xf32, #tpu.memory_space<vmem>>, %arg5: memref<32x1xf32, #tpu.memory_space<vmem>>, %arg6: memref<32x32xf32, #tpu.memory_space<vmem>>, %arg7: memref<32x1xf32, #tpu.memory_space<vmem>>, %arg8: memref<32x128xf32, #tpu.memory_space<vmem>>, %arg9: memref<1x128xf32, #tpu.memory_space<vmem>>, %arg10: memref<1x8x128xf32, #tpu.memory_space<vmem>>) attributes {dimension_semantics = [#tpu.dimension_semantics<parallel>], iteration_bounds = array<i64: 1>, scalar_prefetch = 0 : i64, scratch_operands = 0 : i64, tpu.core_type = #tpu.core_type<tc>, window_params = [{transform_indices = @transform_0, window_bounds = array<i64: 8, 8, 8>}, {transform_indices = @transform_1, window_bounds = array<i64: 8, 1, 8>}, {transform_indices = @transform_2, window_bounds = array<i64: 8, 1, 8>}, {pipeline_mode = #tpu.pipeline_mode<synchronous>, transform_indices = @transform_3, window_bounds = array<i64: 32, 1>}, {pipeline_mode = #tpu.pipeline_mode<synchronous>, transform_indices = @transform_4, window_bounds = array<i64: 32, 1>}, {pipeline_mode = #tpu.pipeline_mode<synchronous>, transform_indices = @transform_5, window_bounds = array<i64: 32, 32>}, {pipeline_mode = #tpu.pipeline_mode<synchronous>, transform_indices = @transform_6, window_bounds = array<i64: 32, 1>}, {pipeline_mode = #tpu.pipeline_mode<synchronous>, transform_indices = @transform_7, window_bounds = array<i64: 32, 128>}, {pipeline_mode = #tpu.pipeline_mode<synchronous>, transform_indices = @transform_8, window_bounds = array<i64: 1, 128>}, {transform_indices = @transform_9, window_bounds = array<i64: 1, 8, 128>}]} {
    %c0 = arith.constant 0 : index
    %c0_0 = arith.constant 0 : index
    %c0_1 = arith.constant 0 : index
    %0 = vector.load %arg1[%c0, %c0_0, %c0_1] : memref<8x8x8xi8, #tpu.memory_space<vmem>>, vector<8x8x8xi8>
    %1 = arith.sitofp %0 : vector<8x8x8xi8> to vector<8x8x8xf32>
    %c0_2 = arith.constant 0 : index
    %c0_3 = arith.constant 0 : index
    %c0_4 = arith.constant 0 : index
    %2 = vector.load %arg2[%c0_2, %c0_3, %c0_4] : memref<8x1x8xf32, #tpu.memory_space<vmem>>, vector<8x1x8xf32>
    %c0_5 = arith.constant 0 : index
    %c0_6 = arith.constant 0 : index
    %c0_7 = arith.constant 0 : index
    %3 = vector.load %arg3[%c0_5, %c0_6, %c0_7] : memref<8x1x8xf32, #tpu.memory_space<vmem>>, vector<8x1x8xf32>
    %c0_8 = arith.constant 0 : index
    %c0_9 = arith.constant 0 : index
    %4 = vector.load %arg4[%c0_8, %c0_9] : memref<32x1xf32, #tpu.memory_space<vmem>>, vector<32x1xf32>
    %c0_10 = arith.constant 0 : index
    %c0_11 = arith.constant 0 : index
    %5 = vector.load %arg5[%c0_10, %c0_11] : memref<32x1xf32, #tpu.memory_space<vmem>>, vector<32x1xf32>
    %c0_12 = arith.constant 0 : index
    %c0_13 = arith.constant 0 : index
    %6 = vector.load %arg7[%c0_12, %c0_13] : memref<32x1xf32, #tpu.memory_space<vmem>>, vector<32x1xf32>
    %7 = vector.shape_cast %4 : vector<32x1xf32> to vector<1x32x1xf32>
    %8 = vector.broadcast %7 : vector<1x32x1xf32> to vector<8x32x8xf32>
    %9 = vector.broadcast %2 : vector<8x1x8xf32> to vector<8x32x8xf32>
    %10 = arith.mulf %8, %9 : vector<8x32x8xf32>
    "tpu.trace_start"() <{level = 10 : i32, message = "ghk,gkn->ghn"}> : () -> ()
    %cst = arith.constant dense<0.000000e+00> : vector<8x32x8xf32>
    %11 = tpu.matmul %10, %1, %cst {dimension_numbers = #tpu.dot_dimension_numbers<[2], [1], [1], [2], [0, 0, 0, 1, 1, 2], [0], [0]>} : vector<8x32x8xf32>, vector<8x8x8xf32>, vector<8x32x8xf32> -> vector<8x32x8xf32>
    "tpu.trace_stop"() : () -> ()
    %12 = vector.broadcast %3 : vector<8x1x8xf32> to vector<8x32x8xf32>
    %13 = arith.mulf %11, %12 : vector<8x32x8xf32>
    %14 = vector.shape_cast %5 : vector<32x1xf32> to vector<1x32x1xf32>
    %15 = vector.broadcast %14 : vector<1x32x1xf32> to vector<8x32x8xf32>
    %16 = arith.addf %13, %15 : vector<8x32x8xf32>
    %cst_14 = arith.constant 0.000000e+00 : f32
    %17 = vector.broadcast %cst_14 : f32 to vector<8x32x8xf32>
    %18 = arith.maximumf %16, %17 : vector<8x32x8xf32>
    %c0_15 = arith.constant 0 : index
    %c0_16 = arith.constant 0 : index
    %19 = vector.load %arg6[%c0_15, %c0_16] : memref<32x32xf32, #tpu.memory_space<vmem>>, vector<32x32xf32>
    %20 = vector.shape_cast %19 : vector<32x32xf32> to vector<1x32x32xf32>
    %21 = vector.shape_cast %20 : vector<1x32x32xf32> to vector<1x32x32xf32>
    %22 = vector.broadcast %21 : vector<1x32x32xf32> to vector<8x32x32xf32>
    "tpu.trace_start"() <{level = 10 : i32, message = "ghk,gkn->ghn"}> : () -> ()
    %cst_17 = arith.constant dense<0.000000e+00> : vector<8x32x8xf32>
    %23 = tpu.matmul %22, %18, %cst_17 {dimension_numbers = #tpu.dot_dimension_numbers<[2], [1], [1], [2], [0, 0, 0, 1, 1, 2], [0], [0]>} : vector<8x32x32xf32>, vector<8x32x8xf32>, vector<8x32x8xf32> -> vector<8x32x8xf32>
    %cst_18 = arith.constant dense<0.000000e+00> : vector<8x32x8xf32>
    %24 = tpu.matmul %23, %1, %cst_18 {dimension_numbers = #tpu.dot_dimension_numbers<[2], [1], [1], [2], [0, 0, 0, 1, 1, 2], [0], [0]>} : vector<8x32x8xf32>, vector<8x8x8xf32>, vector<8x32x8xf32> -> vector<8x32x8xf32>
    "tpu.trace_stop"() : () -> ()
    %25 = vector.broadcast %3 : vector<8x1x8xf32> to vector<8x32x8xf32>
    %26 = arith.mulf %24, %25 : vector<8x32x8xf32>
    %27 = vector.shape_cast %6 : vector<32x1xf32> to vector<1x32x1xf32>
    %28 = vector.broadcast %27 : vector<1x32x1xf32> to vector<8x32x8xf32>
    %29 = arith.addf %26, %28 : vector<8x32x8xf32>
    %cst_19 = arith.constant 0.000000e+00 : f32
    %30 = vector.broadcast %cst_19 : f32 to vector<8x32x8xf32>
    %31 = arith.maximumf %29, %30 : vector<8x32x8xf32>
    %cst_20 = arith.constant dense<0.000000e+00> : vector<8x32xf32>
    %32 = vector.multi_reduction <add>, %31, %cst_20 [2] : vector<8x32x8xf32> to vector<8x32xf32>
    %cst_21 = arith.constant 8.000000e+00 : f32
    %33 = vector.broadcast %cst_21 : f32 to vector<8x32xf32>
    %34 = arith.divf %32, %33 : vector<8x32xf32>
    %c0_22 = arith.constant 0 : index
    %c0_23 = arith.constant 0 : index
    %35 = vector.load %arg8[%c0_22, %c0_23] : memref<32x128xf32, #tpu.memory_space<vmem>>, vector<32x128xf32>
    %cst_24 = arith.constant dense<0.000000e+00> : vector<8x128xf32>
    %36 = tpu.matmul %34, %35, %cst_24 {dimension_numbers = #tpu.dot_dimension_numbers<[1], [0], [0], [1], [0, 0, 1, 1], [], []>} : vector<8x32xf32>, vector<32x128xf32>, vector<8x128xf32> -> vector<8x128xf32>
    %c0_25 = arith.constant 0 : index
    %c0_26 = arith.constant 0 : index
    %37 = vector.load %arg9[%c0_25, %c0_26] : memref<1x128xf32, #tpu.memory_space<vmem>>, vector<1x128xf32>
    %38 = vector.broadcast %37 : vector<1x128xf32> to vector<8x128xf32>
    %39 = arith.addf %36, %38 : vector<8x128xf32>
    %c0_27 = arith.constant 0 : index
    %c0_28 = arith.constant 0 : index
    %c0_29 = arith.constant 0 : index
    %40 = vector.load %arg10[%c0_27, %c0_28, %c0_29] : memref<1x8x128xf32, #tpu.memory_space<vmem>>, vector<1x8x128xf32>
    %41 = vector.shape_cast %40 : vector<1x8x128xf32> to vector<8x128xf32>
    %42 = vector.shape_cast %39 : vector<8x128xf32> to vector<1x8x128xf32>
    tpu.vector_store %arg10[%c0_27, %c0_28, %c0_29], %42 {strides = array<i32>} : memref<1x8x128xf32, #tpu.memory_space<vmem>>, vector<1x8x128xf32>,
    return
  }
  func.func @transform_0(%arg0: i32) -> (i32, i32, i32) {
    %c0_i32 = arith.constant 0 : i32
    %c0_i32_0 = arith.constant 0 : i32
    %c0_i32_1 = arith.constant 0 : i32
    return %arg0, %c0_i32, %c0_i32_0 : i32, i32, i32
  }
  func.func @transform_1(%arg0: i32) -> (i32, i32, i32) {
    %c0_i32 = arith.constant 0 : i32
    %c0_i32_0 = arith.constant 0 : i32
    %c0_i32_1 = arith.constant 0 : i32
    return %arg0, %c0_i32, %c0_i32_0 : i32, i32, i32
  }
  func.func @transform_2(%arg0: i32) -> (i32, i32, i32) {
    %c0_i32 = arith.constant 0 : i32
    %c0_i32_0 = arith.constant 0 : i32
    %c0_i32_1 = arith.constant 0 : i32
    return %arg0, %c0_i32, %c0_i32_0 : i32, i32, i32
  }
  func.func @transform_3(%arg0: i32) -> (i32, i32) {
    %c0_i32 = arith.constant 0 : i32
    %c0_i32_0 = arith.constant 0 : i32
    %c0_i32_1 = arith.constant 0 : i32
    return %c0_i32, %c0_i32_0 : i32, i32
  }
  func.func @transform_4(%arg0: i32) -> (i32, i32) {
    %c0_i32 = arith.constant 0 : i32
    %c0_i32_0 = arith.constant 0 : i32
    %c0_i32_1 = arith.constant 0 : i32
    return %c0_i32, %c0_i32_0 : i32, i32
  }
  func.func @transform_5(%arg0: i32) -> (i32, i32) {
    %c0_i32 = arith.constant 0 : i32
    %c0_i32_0 = arith.constant 0 : i32
    %c0_i32_1 = arith.constant 0 : i32
    return %c0_i32, %c0_i32_0 : i32, i32
  }
  func.func @transform_6(%arg0: i32) -> (i32, i32) {
    %c0_i32 = arith.constant 0 : i32
    %c0_i32_0 = arith.constant 0 : i32
    %c0_i32_1 = arith.constant 0 : i32
    return %c0_i32, %c0_i32_0 : i32, i32
  }
  func.func @transform_7(%arg0: i32) -> (i32, i32) {
    %c0_i32 = arith.constant 0 : i32
    %c0_i32_0 = arith.constant 0 : i32
    %c0_i32_1 = arith.constant 0 : i32
    return %c0_i32, %c0_i32_0 : i32, i32
  }
  func.func @transform_8(%arg0: i32) -> (i32, i32) {
    %c0_i32 = arith.constant 0 : i32
    %c0_i32_0 = arith.constant 0 : i32
    %c0_i32_1 = arith.constant 0 : i32
    return %c0_i32, %c0_i32_0 : i32, i32
  }
  func.func @transform_9(%arg0: i32) -> (i32, i32, i32) {
    %c0_i32 = arith.constant 0 : i32
    %c0_i32_0 = arith.constant 0 : i32
    %c0_i32_1 = arith.constant 0 : i32
    return %arg0, %c0_i32, %c0_i32_0 : i32, i32, i32
  }
}

</mosaic_0001>

<llo_original>
// kernel: tpu_custom_call.1
$region0: #{tpu_custom_call.1}
  #allocation0 [shape = 'u32[]', space=smem, size = 0x4, offset = 0x4, fixed_abs, tag = 'smem constant byte address 0x4 - core index']
  #allocation1 [shape = 'u32[144,128]{1,0:T(1,128)}', space=vmem, size = 0x12000, scoped, tag = 'internal scratch']
  %s0 = inlined_call_operand.vmem [shape: s8[8,8,8], index: 0, kind: input, shape index: {}]
  %s1 = inlined_call_operand.vmem [shape: f32[8,1,8], index: 1, kind: input, shape index: {}]
  %s2 = inlined_call_operand.vmem [shape: f32[8,1,8], index: 2, kind: input, shape index: {}]
  %s3 = inlined_call_operand.vmem [shape: f32[32,1], index: 3, kind: input, shape index: {}]
  %s4 = inlined_call_operand.vmem [shape: f32[32,1], index: 4, kind: input, shape index: {}]
  %s5 = inlined_call_operand.vmem [shape: f32[32,32], index: 5, kind: input, shape index: {}]
  %s6 = inlined_call_operand.vmem [shape: f32[32,1], index: 6, kind: input, shape index: {}]
  %s7 = inlined_call_operand.vmem [shape: f32[32,128], index: 7, kind: input, shape index: {}]
  %s8 = inlined_call_operand.vmem [shape: f32[1,128], index: 8, kind: input, shape index: {}]
  %s9 = inlined_call_operand.hbm [shape: f32[1,8,128], index: 9, kind: output, shape index: {}]
  %s10 = sld [smem:[#allocation0]]
  $region46: #{tpu_custom_call.1} parent=0
    _
  %s12 = ssub.s32 1, %s10
  %s13 = scalar_select 0, %s12, %s10
  $region1: #{tpu_custom_call.1} parent=0
    #allocation2 [shape = 'u8[4096]{0}', space=vmem, size = 0x1000, scoped, tag = 'output window, operand 0, single buffered']
    #allocation3 [shape = 's32[1]{0}', space=sflag, size = 0x4, scoped, tag = 'scoped memory for tpu_custom_call.1']
    %14 = vsyncpa [#allocation3], 0
    // Predicated region
    $region2: #{tpu_custom_call.1} parent=1 // pred_check
      _
    $region3: #{tpu_custom_call.1} parent=1 // pred_check_branch
      %16 = sbr.rel (0) target = $region5
    $region4: #{tpu_custom_call.1} parent=1 // pred_region
      _
    $region5: #{tpu_custom_call.1} parent=1 // pred_fallthru
      _
    // Predicated region
    $region6: #{tpu_custom_call.1} parent=1 // pred_check
      _
    $region7: #{tpu_custom_call.1} parent=1 // pred_check_branch
      %18 = sbr.rel (0) target = $region9
    $region8: #{tpu_custom_call.1} parent=1 // pred_region
      _
    $region9: #{tpu_custom_call.1} parent=1 // pred_fallthru
      _
    // Predicated region
    $region10: #{tpu_custom_call.1} parent=1 // pred_check
      _
    $region11: #{tpu_custom_call.1} parent=1 // pred_check_branch
      %20 = sbr.rel (0) target = $region13
    $region12: #{tpu_custom_call.1} parent=1 // pred_region
      _
    $region13: #{tpu_custom_call.1} parent=1 // pred_fallthru
      _
    // Predicated region
    $region14: #{tpu_custom_call.1} parent=1 // pred_check
      _
    $region15: #{tpu_custom_call.1} parent=1 // pred_check_branch
      %22 = sbr.rel (0) target = $region17
    $region16: #{tpu_custom_call.1} parent=1 // pred_region
      _
    $region17: #{tpu_custom_call.1} parent=1 // pred_fallthru
      _
    // Predicated region
    $region18: #{tpu_custom_call.1} parent=1 // pred_check
      _
    $region19: #{tpu_custom_call.1} parent=1 // pred_check_branch
      %24 = sbr.rel (0) target = $region21
    $region20: #{tpu_custom_call.1} parent=1 // pred_region
      _
    $region21: #{tpu_custom_call.1} parent=1 // pred_fallthru
      _
    // Predicated region
    $region22: #{tpu_custom_call.1} parent=1 // pred_check
      _
    $region23: #{tpu_custom_call.1} parent=1 // pred_check_branch
      %26 = sbr.rel (0) target = $region25
    $region24: #{tpu_custom_call.1} parent=1 // pred_region
      _
    $region25: #{tpu_custom_call.1} parent=1 // pred_fallthru
      _
    // Predicated region
    $region26: #{tpu_custom_call.1} parent=1 // pred_check
      _
    $region27: #{tpu_custom_call.1} parent=1 // pred_check_branch
      %28 = sbr.rel (0) target = $region29
    $region28: #{tpu_custom_call.1} parent=1 // pred_region
      _
    $region29: #{tpu_custom_call.1} parent=1 // pred_fallthru
      _
    // Predicated region
    $region30: #{tpu_custom_call.1} parent=1 // pred_check
      _
    $region31: #{tpu_custom_call.1} parent=1 // pred_check_branch
      %30 = sbr.rel (0) target = $region33
    $region32: #{tpu_custom_call.1} parent=1 // pred_region
      _
    $region33: #{tpu_custom_call.1} parent=1 // pred_fallthru
      _
    // Predicated region
    $region34: #{tpu_custom_call.1} parent=1 // pred_check
      _
    $region35: #{tpu_custom_call.1} parent=1 // pred_check_branch
      %32 = sbr.rel (0) target = $region37
    $region36: #{tpu_custom_call.1} parent=1 // pred_region
      _
    $region37: #{tpu_custom_call.1} parent=1 // pred_fallthru
      _
    %v33 = vld [vmem:[%s0] sm:$0x3]
    %v34 = vld [vmem:[%s0 + $0x2] sm:$0x3]
    %v35 = vld [vmem:[%s0 + $0x4] sm:$0x3]
    %v36 = vld [vmem:[%s0 + $0x6] sm:$0x3]
    %v37 = vld [vmem:[%s0 + $0x8] sm:$0x3]
    %v38 = vld [vmem:[%s0 + $0xa] sm:$0x3]
    %v39 = vld [vmem:[%s0 + $0xc] sm:$0x3]
    %v40 = vld [vmem:[%s0 + $0xe] sm:$0x3]
    %v41 = vunpack.c.0.s8 %v33
    %v42 = vunpack.c.0.s8 %v34
    %v43 = vunpack.c.0.s8 %v35
    %v44 = vunpack.c.0.s8 %v36
    %v45 = vunpack.c.0.s8 %v37
    %v46 = vunpack.c.0.s8 %v38
    %v47 = vunpack.c.0.s8 %v39
    %v48 = vunpack.c.0.s8 %v40
    %v49 = vcvt.s32.f32 %v41
    %v50 = vcvt.s32.f32 %v42
    %v51 = vcvt.s32.f32 %v43
    %v52 = vcvt.s32.f32 %v44
    %v53 = vcvt.s32.f32 %v45
    %v54 = vcvt.s32.f32 %v46
    %v55 = vcvt.s32.f32 %v47
    %v56 = vcvt.s32.f32 %v48
    %v57 = vld [vmem:[%s1] sm:$0x1]
    %v58 = vld [vmem:[%s1 + $0x1] sm:$0x1]
    %v59 = vld [vmem:[%s1 + $0x2] sm:$0x1]
    %v60 = vld [vmem:[%s1 + $0x3] sm:$0x1]
    %v61 = vld [vmem:[%s1 + $0x4] sm:$0x1]
    %v62 = vld [vmem:[%s1 + $0x5] sm:$0x1]
    %v63 = vld [vmem:[%s1 + $0x6] sm:$0x1]
    %v64 = vld [vmem:[%s1 + $0x7] sm:$0x1]
    %v65 = vld [vmem:[%s2] sm:$0x1]
    %v66 = vld [vmem:[%s2 + $0x1] sm:$0x1]
    %v67 = vld [vmem:[%s2 + $0x2] sm:$0x1]
    %v68 = vld [vmem:[%s2 + $0x3] sm:$0x1]
    %v69 = vld [vmem:[%s2 + $0x4] sm:$0x1]
    %v70 = vld [vmem:[%s2 + $0x5] sm:$0x1]
    %v71 = vld [vmem:[%s2 + $0x6] sm:$0x1]
    %v72 = vld [vmem:[%s2 + $0x7] sm:$0x1]
    %v73 = vld [vmem:[%s3] sm:$0xff]
    %v74 = vld [vmem:[%s3 + $0x8] sm:$0xff]
    %v75 = vld [vmem:[%s3 + $0x10] sm:$0xff]
    %v76 = vld [vmem:[%s3 + $0x18] sm:$0xff]
    %v77 = vld [vmem:[%s4] sm:$0xff]
    %v78 = vld [vmem:[%s4 + $0x8] sm:$0xff]
    %v79 = vld [vmem:[%s4 + $0x10] sm:$0xff]
    %v80 = vld [vmem:[%s4 + $0x18] sm:$0xff]
    %v81 = vld [vmem:[%s6] sm:$0xff]
    %v82 = vld [vmem:[%s6 + $0x8] sm:$0xff]
    %v83 = vld [vmem:[%s6 + $0x10] sm:$0xff]
    %v84 = vld [vmem:[%s6 + $0x18] sm:$0xff]
    %86 = vset.pattern.permute.xlu0 0
    %87 = vperm.xlu0 %86, %v73
    %v88 = vpop.permute.xlu0 %87
    %91 = vset.pattern.permute.xlu0 0
    %92 = vperm.xlu0 %91, %v74
    %v93 = vpop.permute.xlu0 %92
    %96 = vset.pattern.permute.xlu0 0
    %97 = vperm.xlu0 %96, %v75
    %v98 = vpop.permute.xlu0 %97
    %101 = vset.pattern.permute.xlu0 0
    %102 = vperm.xlu0 %101, %v76
    %v103 = vpop.permute.xlu0 %102
    %v113 = vlaneseq
    %v114 = vshrl.u32 %v113, 7
    %v115 = vsub.s32 0, %v114
    %v116 = vrot.slane %v57, %v115
    %v117 = vlaneseq
    %v118 = vshrl.u32 %v117, 7
    %v119 = vsub.s32 0, %v118
    %v120 = vrot.slane %v58, %v119
    %v121 = vlaneseq
    %v122 = vshrl.u32 %v121, 7
    %v123 = vsub.s32 0, %v122
    %v124 = vrot.slane %v59, %v123
    %v125 = vlaneseq
    %v126 = vshrl.u32 %v125, 7
    %v127 = vsub.s32 0, %v126
    %v128 = vrot.slane %v60, %v127
    %v129 = vlaneseq
    %v130 = vshrl.u32 %v129, 7
    %v131 = vsub.s32 0, %v130
    %v132 = vrot.slane %v61, %v131
    %v133 = vlaneseq
    %v134 = vshrl.u32 %v133, 7
    %v135 = vsub.s32 0, %v134
    %v136 = vrot.slane %v62, %v135
    %v137 = vlaneseq
    %v138 = vshrl.u32 %v137, 7
    %v139 = vsub.s32 0, %v138
    %v140 = vrot.slane %v63, %v139
    %v141 = vlaneseq
    %v142 = vshrl.u32 %v141, 7
    %v143 = vsub.s32 0, %v142
    %v144 = vrot.slane %v64, %v143
    %v153 = vmul.f32 %v88, %v116
    %v154 = vmul.f32 %v93, %v116
    %v155 = vmul.f32 %v98, %v116
    %v156 = vmul.f32 %v103, %v116
    %v157 = vmul.f32 %v88, %v120
    %v158 = vmul.f32 %v93, %v120
    %v159 = vmul.f32 %v98, %v120
    %v160 = vmul.f32 %v103, %v120
    %v161 = vmul.f32 %v88, %v124
    %v162 = vmul.f32 %v93, %v124
    %v163 = vmul.f32 %v98, %v124
    %v164 = vmul.f32 %v103, %v124
    %v165 = vmul.f32 %v88, %v128
    %v166 = vmul.f32 %v93, %v128
    %v167 = vmul.f32 %v98, %v128
    %v168 = vmul.f32 %v103, %v128
    %v169 = vmul.f32 %v88, %v132
    %v170 = vmul.f32 %v93, %v132
    %v171 = vmul.f32 %v98, %v132
    %v172 = vmul.f32 %v103, %v132
    %v173 = vmul.f32 %v88, %v136
    %v174 = vmul.f32 %v93, %v136
    %v175 = vmul.f32 %v98, %v136
    %v176 = vmul.f32 %v103, %v136
    %v177 = vmul.f32 %v88, %v140
    %v178 = vmul.f32 %v93, %v140
    %v179 = vmul.f32 %v98, %v140
    %v180 = vmul.f32 %v103, %v140
    %v181 = vmul.f32 %v88, %v144
    %v182 = vmul.f32 %v93, %v144
    %v183 = vmul.f32 %v98, %v144
    %v184 = vmul.f32 %v103, %v144
    %vm185 = vcmask 64512
    %v187 = vsel %vm185, %v153, 0
    %v190 = vsel %vm185, %v154, 0
    %v193 = vsel %vm185, %v155, 0
    %v196 = vsel %vm185, %v156, 0
    %198 = vmatprep.subr.mxu0 0.0
    %199 = vmatpush1.msra.mxu0 %v49
    %200 = vmatprep.subr.mxu0 0.0
    %201 = vmatpush1.msra.mxu0 0.0
    %202 = vmatprep.subr.mxu0 0.0
    %203 = vmatpush1.msra.mxu0 0.0
    %204 = vmatprep.subr.mxu0 0.0
    %205 = vmatpush1.msra.mxu0 0.0
    %206 = vmatprep.subr.mxu0 0.0
    %207 = vmatpush1.msra.mxu0 0.0
    %208 = vmatprep.subr.mxu0 0.0
    %209 = vmatpush1.msra.mxu0 0.0
    %210 = vmatprep.subr.mxu0 0.0
    %211 = vmatpush1.msra.mxu0 0.0
    %212 = vmatprep.subr.mxu0 0.0
    %213 = vmatpush1.msra.mxu0 0.0
    %214 = vmatprep.subr.mxu0 0.0
    %215 = vmatpush1.msra.mxu0 0.0
    %216 = vmatprep.subr.mxu0 0.0
    %217 = vmatpush1.msra.mxu0 0.0
    %218 = vmatprep.subr.mxu0 0.0
    %219 = vmatpush1.msra.mxu0 0.0
    %220 = vmatprep.subr.mxu0 0.0
    %221 = vmatpush1.msra.mxu0 0.0
    %222 = vmatprep.subr.mxu0 0.0
    %223 = vmatpush1.msra.mxu0 0.0
    %224 = vmatprep.subr.mxu0 0.0
    %225 = vmatpush1.msra.mxu0 0.0
    %226 = vmatprep.subr.mxu0 0.0
    %227 = vmatpush1.msra.mxu0 0.0
    %228 = vmatprep.subr.mxu0 0.0
    %229 = vmatpush1.msra.mxu0 0.0
    %230 = vmatprep.subr.mxu0 0.0
    %231 = vmatpush1.msra.mxu0 0.0
    %232 = vmatprep.subr.mxu0 0.0
    %233 = vmatpush1.msra.mxu0 0.0
    %234 = vmatprep.subr.mxu0 0.0
    %235 = vmatpush1.msra.mxu0 0.0
    %236 = vmatprep.subr.mxu0 0.0
    %237 = vmatpush1.msra.mxu0 0.0
    %238 = vmatprep.subr.mxu0 0.0
    %239 = vmatpush1.msra.mxu0 0.0
    %240 = vmatprep.subr.mxu0 0.0
    %241 = vmatpush1.msra.mxu0 0.0
    %242 = vmatprep.subr.mxu0 0.0
    %243 = vmatpush1.msra.mxu0 0.0
    %244 = vmatprep.subr.mxu0 0.0
    %245 = vmatpush1.msra.mxu0 0.0
    %246 = vmatprep.subr.mxu0 0.0
    %247 = vmatpush1.msra.mxu0 0.0
    %248 = vmatprep.subr.mxu0 0.0
    %249 = vmatpush1.msra.mxu0 0.0
    %250 = vmatprep.subr.mxu0 0.0
    %251 = vmatpush1.msra.mxu0 0.0
    %252 = vmatprep.subr.mxu0 0.0
    %253 = vmatpush1.msra.mxu0 0.0
    %254 = vmatprep.subr.mxu0 0.0
    %255 = vmatpush1.msra.mxu0 0.0
    %256 = vmatprep.subr.mxu0 0.0
    %257 = vmatpush1.msra.mxu0 0.0
    %258 = vmatprep.subr.mxu0 0.0
    %259 = vmatpush1.msra.mxu0 0.0
    %260 = vmatprep.subr.mxu0 0.0
    %261 = vmatpush1.msra.mxu0 0.0
    %262 = vmatprep.mubr.f32.mxu0 0.0
    %263 = vmatmul.mubr.f32.gmra.mrb[0].mxu0 %v187
    %v264 = vpop.f32.mrb[0].mxu0
    %v265 = vadd.f32 0.0, %v264
    %v266 = vpop.f32.mrb[0].mxu0
    %267 = vmatprep.mubr.f32.mxu0 0.0
    %268 = vmatmul.mubr.f32.gmra.mrb[0].mxu0 %v190
    %v269 = vpop.f32.mrb[0].mxu0
    %v270 = vadd.f32 0.0, %v269
    %v271 = vpop.f32.mrb[0].mxu0
    %272 = vmatprep.mubr.f32.mxu0 0.0
    %273 = vmatmul.mubr.f32.gmra.mrb[0].mxu0 %v193
    %v274 = vpop.f32.mrb[0].mxu0
    %v275 = vadd.f32 0.0, %v274
    %v276 = vpop.f32.mrb[0].mxu0
    %277 = vmatprep.mubr.f32.mxu0 0.0
    %278 = vmatmul.mubr.f32.gmra.mrb[0].mxu0 %v196
    %v279 = vpop.f32.mrb[0].mxu0
    %v280 = vadd.f32 0.0, %v279
    %v281 = vpop.f32.mrb[0].mxu0
    %282 = vdwg.mxu0
    %v284 = vsel %vm185, %v157, 0
    %v287 = vsel %vm185, %v158, 0
    %v290 = vsel %vm185, %v159, 0
    %v293 = vsel %vm185, %v160, 0
    %295 = vmatprep.subr.mxu0 0.0
    %296 = vmatpush1.msra.mxu0 %v50
    %297 = vmatprep.subr.mxu0 0.0
    %298 = vmatpush1.msra.mxu0 0.0
    %299 = vmatprep.subr.mxu0 0.0
    %300 = vmatpush1.msra.mxu0 0.0
    %301 = vmatprep.subr.mxu0 0.0
    %302 = vmatpush1.msra.mxu0 0.0
    %303 = vmatprep.subr.mxu0 0.0
    %304 = vmatpush1.msra.mxu0 0.0
    %305 = vmatprep.subr.mxu0 0.0
    %306 = vmatpush1.msra.mxu0 0.0
    %307 = vmatprep.subr.mxu0 0.0
    %308 = vmatpush1.msra.mxu0 0.0
    %309 = vmatprep.subr.mxu0 0.0
    %310 = vmatpush1.msra.mxu0 0.0
    %311 = vmatprep.subr.mxu0 0.0
    %312 = vmatpush1.msra.mxu0 0.0
    %313 = vmatprep.subr.mxu0 0.0
    %314 = vmatpush1.msra.mxu0 0.0
    %315 = vmatprep.subr.mxu0 0.0
    %316 = vmatpush1.msra.mxu0 0.0
    %317 = vmatprep.subr.mxu0 0.0
    %318 = vmatpush1.msra.mxu0 0.0
    %319 = vmatprep.subr.mxu0 0.0
    %320 = vmatpush1.msra.mxu0 0.0
    %321 = vmatprep.subr.mxu0 0.0
    %322 = vmatpush1.msra.mxu0 0.0
    %323 = vmatprep.subr.mxu0 0.0
    %324 = vmatpush1.msra.mxu0 0.0
    %325 = vmatprep.subr.mxu0 0.0
    %326 = vmatpush1.msra.mxu0 0.0
    %327 = vmatprep.subr.mxu0 0.0
    %328 = vmatpush1.msra.mxu0 0.0
    %329 = vmatprep.subr.mxu0 0.0
    %330 = vmatpush1.msra.mxu0 0.0
    %331 = vmatprep.subr.mxu0 0.0
    %332 = vmatpush1.msra.mxu0 0.0
    %333 = vmatprep.subr.mxu0 0.0
    %334 = vmatpush1.msra.mxu0 0.0
    %335 = vmatprep.subr.mxu0 0.0
    %336 = vmatpush1.msra.mxu0 0.0
    %337 = vmatprep.subr.mxu0 0.0
    %338 = vmatpush1.msra.mxu0 0.0
    %339 = vmatprep.subr.mxu0 0.0
    %340 = vmatpush1.msra.mxu0 0.0
    %341 = vmatprep.subr.mxu0 0.0
    %342 = vmatpush1.msra.mxu0 0.0
    %343 = vmatprep.subr.mxu0 0.0
    %344 = vmatpush1.msra.mxu0 0.0
    %345 = vmatprep.subr.mxu0 0.0
    %346 = vmatpush1.msra.mxu0 0.0
    %347 = vmatprep.subr.mxu0 0.0
    %348 = vmatpush1.msra.mxu0 0.0
    %349 = vmatprep.subr.mxu0 0.0
    %350 = vmatpush1.msra.mxu0 0.0
    %351 = vmatprep.subr.mxu0 0.0
    %352 = vmatpush1.msra.mxu0 0.0
    %353 = vmatprep.subr.mxu0 0.0
    %354 = vmatpush1.msra.mxu0 0.0
    %355 = vmatprep.subr.mxu0 0.0
    %356 = vmatpush1.msra.mxu0 0.0
    %357 = vmatprep.subr.mxu0 0.0
    %358 = vmatpush1.msra.mxu0 0.0
    %359 = vmatprep.mubr.f32.mxu0 0.0
    %360 = vmatmul.mubr.f32.gmra.mrb[0].mxu0 %v284
    %v361 = vpop.f32.mrb[0].mxu0
    %v362 = vadd.f32 0.0, %v361
    %v363 = vpop.f32.mrb[0].mxu0
    %364 = vmatprep.mubr.f32.mxu0 0.0
    %365 = vmatmul.mubr.f32.gmra.mrb[0].mxu0 %v287
    %v366 = vpop.f32.mrb[0].mxu0
    %v367 = vadd.f32 0.0, %v366
    %v368 = vpop.f32.mrb[0].mxu0
    %369 = vmatprep.mubr.f32.mxu0 0.0
    %370 = vmatmul.mubr.f32.gmra.mrb[0].mxu0 %v290
    %v371 = vpop.f32.mrb[0].mxu0
    %v372 = vadd.f32 0.0, %v371
    %v373 = vpop.f32.mrb[0].mxu0
    %374 = vmatprep.mubr.f32.mxu0 0.0
    %375 = vmatmul.mubr.f32.gmra.mrb[0].mxu0 %v293
    %v376 = vpop.f32.mrb[0].mxu0
    %v377 = vadd.f32 0.0, %v376
    %v378 = vpop.f32.mrb[0].mxu0
    %379 = vdwg.mxu0
    %v381 = vsel %vm185, %v161, 0
    %v384 = vsel %vm185, %v162, 0
    %v387 = vsel %vm185, %v163, 0
    %v390 = vsel %vm185, %v164, 0
    %392 = vmatprep.subr.mxu0 0.0
    %393 = vmatpush1.msra.mxu0 %v51
    %394 = vmatprep.subr.mxu0 0.0
    %395 = vmatpush1.msra.mxu0 0.0
    %396 = vmatprep.subr.mxu0 0.0
    %397 = vmatpush1.msra.mxu0 0.0
    %398 = vmatprep.subr.mxu0 0.0
    %399 = vmatpush1.msra.mxu0 0.0
    %400 = vmatprep.subr.mxu0 0.0
    %401 = vmatpush1.msra.mxu0 0.0
    %402 = vmatprep.subr.mxu0 0.0
    %403 = vmatpush1.msra.mxu0 0.0
    %404 = vmatprep.subr.mxu0 0.0
    %405 = vmatpush1.msra.mxu0 0.0
    %406 = vmatprep.subr.mxu0 0.0
    %407 = vmatpush1.msra.mxu0 0.0
    %408 = vmatprep.subr.mxu0 0.0
    %409 = vmatpush1.msra.mxu0 0.0
    %410 = vmatprep.subr.mxu0 0.0
    %411 = vmatpush1.msra.mxu0 0.0
    %412 = vmatprep.subr.mxu0 0.0
    %413 = vmatpush1.msra.mxu0 0.0
    %414 = vmatprep.subr.mxu0 0.0
    %415 = vmatpush1.msra.mxu0 0.0
    %416 = vmatprep.subr.mxu0 0.0
    %417 = vmatpush1.msra.mxu0 0.0
    %418 = vmatprep.subr.mxu0 0.0
    %419 = vmatpush1.msra.mxu0 0.0
    %420 = vmatprep.subr.mxu0 0.0
    %421 = vmatpush1.msra.mxu0 0.0
    %422 = vmatprep.subr.mxu0 0.0
    %423 = vmatpush1.msra.mxu0 0.0
    %424 = vmatprep.subr.mxu0 0.0
    %425 = vmatpush1.msra.mxu0 0.0
    %426 = vmatprep.subr.mxu0 0.0
    %427 = vmatpush1.msra.mxu0 0.0
    %428 = vmatprep.subr.mxu0 0.0
    %429 = vmatpush1.msra.mxu0 0.0
    %430 = vmatprep.subr.mxu0 0.0
    %431 = vmatpush1.msra.mxu0 0.0
    %432 = vmatprep.subr.mxu0 0.0
    %433 = vmatpush1.msra.mxu0 0.0
    %434 = vmatprep.subr.mxu0 0.0
    %435 = vmatpush1.msra.mxu0 0.0
    %436 = vmatprep.subr.mxu0 0.0
    %437 = vmatpush1.msra.mxu0 0.0
    %438 = vmatprep.subr.mxu0 0.0
    %439 = vmatpush1.msra.mxu0 0.0
    %440 = vmatprep.subr.mxu0 0.0
    %441 = vmatpush1.msra.mxu0 0.0
    %442 = vmatprep.subr.mxu0 0.0
    %443 = vmatpush1.msra.mxu0 0.0
    %444 = vmatprep.subr.mxu0 0.0
    %445 = vmatpush1.msra.mxu0 0.0
    %446 = vmatprep.subr.mxu0 0.0
    %447 = vmatpush1.msra.mxu0 0.0
    %448 = vmatprep.subr.mxu0 0.0
    %449 = vmatpush1.msra.mxu0 0.0
    %450 = vmatprep.subr.mxu0 0.0
    %451 = vmatpush1.msra.mxu0 0.0
    %452 = vmatprep.subr.mxu0 0.0
    %453 = vmatpush1.msra.mxu0 0.0
    %454 = vmatprep.subr.mxu0 0.0
    %455 = vmatpush1.msra.mxu0 0.0
    %456 = vmatprep.mubr.f32.mxu0 0.0
    %457 = vmatmul.mubr.f32.gmra.mrb[0].mxu0 %v381
    %v458 = vpop.f32.mrb[0].mxu0
    %v459 = vadd.f32 0.0, %v458
    %v460 = vpop.f32.mrb[0].mxu0
    %461 = vmatprep.mubr.f32.mxu0 0.0
    %462 = vmatmul.mubr.f32.gmra.mrb[0].mxu0 %v384
    %v463 = vpop.f32.mrb[0].mxu0
    %v464 = vadd.f32 0.0, %v463
    %v465 = vpop.f32.mrb[0].mxu0
    %466 = vmatprep.mubr.f32.mxu0 0.0
    %467 = vmatmul.mubr.f32.gmra.mrb[0].mxu0 %v387
    %v468 = vpop.f32.mrb[0].mxu0
    %v469 = vadd.f32 0.0, %v468
    %v470 = vpop.f32.mrb[0].mxu0
    %471 = vmatprep.mubr.f32.mxu0 0.0
    %472 = vmatmul.mubr.f32.gmra.mrb[0].mxu0 %v390
    %v473 = vpop.f32.mrb[0].mxu0
    %v474 = vadd.f32 0.0, %v473
    %v475 = vpop.f32.mrb[0].mxu0
    %476 = vdwg.mxu0
    %v478 = vsel %vm185, %v165, 0
    %v481 = vsel %vm185, %v166, 0
    %v484 = vsel %vm185, %v167, 0
    %v487 = vsel %vm185, %v168, 0
    %489 = vmatprep.subr.mxu0 0.0
    %490 = vmatpush1.msra.mxu0 %v52
    %491 = vmatprep.subr.mxu0 0.0
    %492 = vmatpush1.msra.mxu0 0.0
    %493 = vmatprep.subr.mxu0 0.0
    %494 = vmatpush1.msra.mxu0 0.0
    %495 = vmatprep.subr.mxu0 0.0
    %496 = vmatpush1.msra.mxu0 0.0
    %497 = vmatprep.subr.mxu0 0.0
    %498 = vmatpush1.msra.mxu0 0.0
    %499 = vmatprep.subr.mxu0 0.0
    %500 = vmatpush1.msra.mxu0 0.0
    %501 = vmatprep.subr.mxu0 0.0
    %502 = vmatpush1.msra.mxu0 0.0
    %503 = vmatprep.subr.mxu0 0.0
    %504 = vmatpush1.msra.mxu0 0.0
    %505 = vmatprep.subr.mxu0 0.0
    %506 = vmatpush1.msra.mxu0 0.0
    %507 = vmatprep.subr.mxu0 0.0
    %508 = vmatpush1.msra.mxu0 0.0
    %509 = vmatprep.subr.mxu0 0.0
    %510 = vmatpush1.msra.mxu0 0.0
    %511 = vmatprep.subr.mxu0 0.0
    %512 = vmatpush1.msra.mxu0 0.0
    %513 = vmatprep.subr.mxu0 0.0
    %514 = vmatpush1.msra.mxu0 0.0
    %515 = vmatprep.subr.mxu0 0.0
    %516 = vmatpush1.msra.mxu0 0.0
    %517 = vmatprep.subr.mxu0 0.0
    %518 = vmatpush1.msra.mxu0 0.0
    %519 = vmatprep.subr.mxu0 0.0
    %520 = vmatpush1.msra.mxu0 0.0
    %521 = vmatprep.subr.mxu0 0.0
    %522 = vmatpush1.msra.mxu0 0.0
    %523 = vmatprep.subr.mxu0 0.0
    %524 = vmatpush1.msra.mxu0 0.0
    %525 = vmatprep.subr.mxu0 0.0
    %526 = vmatpush1.msra.mxu0 0.0
    %527 = vmatprep.subr.mxu0 0.0
    %528 = vmatpush1.msra.mxu0 0.0
    %529 = vmatprep.subr.mxu0 0.0
    %530 = vmatpush1.msra.mxu0 0.0
    %531 = vmatprep.subr.mxu0 0.0
    %532 = vmatpush1.msra.mxu0 0.0
    %533 = vmatprep.subr.mxu0 0.0
    %534 = vmatpush1.msra.mxu0 0.0
    %535 = vmatprep.subr.mxu0 0.0
    %536 = vmatpush1.msra.mxu0 0.0
    %537 = vmatprep.subr.mxu0 0.0
    %538 = vmatpush1.msra.mxu0 0.0
    %539 = vmatprep.subr.mxu0 0.0
    %540 = vmatpush1.msra.mxu0 0.0
    %541 = vmatprep.subr.mxu0 0.0
    %542 = vmatpush1.msra.mxu0 0.0
    %543 = vmatprep.subr.mxu0 0.0
    %544 = vmatpush1.msra.mxu0 0.0
    %545 = vmatprep.subr.mxu0 0.0
    %546 = vmatpush1.msra.mxu0 0.0
    %547 = vmatprep.subr.mxu0 0.0
    %548 = vmatpush1.msra.mxu0 0.0
    %549 = vmatprep.subr.mxu0 0.0
    %550 = vmatpush1.msra.mxu0 0.0
    %551 = vmatprep.subr.mxu0 0.0
    %552 = vmatpush1.msra.mxu0 0.0
    %553 = vmatprep.mubr.f32.mxu0 0.0
    %554 = vmatmul.mubr.f32.gmra.mrb[0].mxu0 %v478
    %v555 = vpop.f32.mrb[0].mxu0
    %v556 = vadd.f32 0.0, %v555
    %v557 = vpop.f32.mrb[0].mxu0
    %558 = vmatprep.mubr.f32.mxu0 0.0
    %559 = vmatmul.mubr.f32.gmra.mrb[0].mxu0 %v481
    %v560 = vpop.f32.mrb[0].mxu0
    %v561 = vadd.f32 0.0, %v560
    %v562 = vpop.f32.mrb[0].mxu0
    %563 = vmatprep.mubr.f32.mxu0 0.0
    %564 = vmatmul.mubr.f32.gmra.mrb[0].mxu0 %v484
    %v565 = vpop.f32.mrb[0].mxu0
    %v566 = vadd.f32 0.0, %v565
    %v567 = vpop.f32.mrb[0].mxu0
    %568 = vmatprep.mubr.f32.mxu0 0.0
    %569 = vmatmul.mubr.f32.gmra.mrb[0].mxu0 %v487
    %v570 = vpop.f32.mrb[0].mxu0
    %v571 = vadd.f32 0.0, %v570
    %v572 = vpop.f32.mrb[0].mxu0
    %573 = vdwg.mxu0
    %v575 = vsel %vm185, %v169, 0
    %v578 = vsel %vm185, %v170, 0
    %v581 = vsel %vm185, %v171, 0
    %v584 = vsel %vm185, %v172, 0
    %586 = vmatprep.subr.mxu0 0.0
    %587 = vmatpush1.msra.mxu0 %v53
    %588 = vmatprep.subr.mxu0 0.0
    %589 = vmatpush1.msra.mxu0 0.0
    %590 = vmatprep.subr.mxu0 0.0
    %591 = vmatpush1.msra.mxu0 0.0
    %592 = vmatprep.subr.mxu0 0.0
    %593 = vmatpush1.msra.mxu0 0.0
    %594 = vmatprep.subr.mxu0 0.0
    %595 = vmatpush1.msra.mxu0 0.0
    %596 = vmatprep.subr.mxu0 0.0
    %597 = vmatpush1.msra.mxu0 0.0
    %598 = vmatprep.subr.mxu0 0.0
    %599 = vmatpush1.msra.mxu0 0.0
    %600 = vmatprep.subr.mxu0 0.0
    %601 = vmatpush1.msra.mxu0 0.0
    %602 = vmatprep.subr.mxu0 0.0
    %603 = vmatpush1.msra.mxu0 0.0
    %604 = vmatprep.subr.mxu0 0.0
    %605 = vmatpush1.msra.mxu0 0.0
    %606 = vmatprep.subr.mxu0 0.0
    %607 = vmatpush1.msra.mxu0 0.0
    %608 = vmatprep.subr.mxu0 0.0
    %609 = vmatpush1.msra.mxu0 0.0
    %610 = vmatprep.subr.mxu0 0.0
    %611 = vmatpush1.msra.mxu0 0.0
    %612 = vmatprep.subr.mxu0 0.0
    %613 = vmatpush1.msra.mxu0 0.0
    %614 = vmatprep.subr.mxu0 0.0
    %615 = vmatpush1.msra.mxu0 0.0
    %616 = vmatprep.subr.mxu0 0.0
    %617 = vmatpush1.msra.mxu0 0.0
    %618 = vmatprep.subr.mxu0 0.0
    %619 = vmatpush1.msra.mxu0 0.0
    %620 = vmatprep.subr.mxu0 0.0
    %621 = vmatpush1.msra.mxu0 0.0
    %622 = vmatprep.subr.mxu0 0.0
    %623 = vmatpush1.msra.mxu0 0.0
    %624 = vmatprep.subr.mxu0 0.0
    %625 = vmatpush1.msra.mxu0 0.0
    %626 = vmatprep.subr.mxu0 0.0
    %627 = vmatpush1.msra.mxu0 0.0
    %628 = vmatprep.subr.mxu0 0.0
    %629 = vmatpush1.msra.mxu0 0.0
    %630 = vmatprep.subr.mxu0 0.0
    %631 = vmatpush1.msra.mxu0 0.0
    %632 = vmatprep.subr.mxu0 0.0
    %633 = vmatpush1.msra.mxu0 0.0
    %634 = vmatprep.subr.mxu0 0.0
    %635 = vmatpush1.msra.mxu0 0.0
    %636 = vmatprep.subr.mxu0 0.0
    %637 = vmatpush1.msra.mxu0 0.0
    %638 = vmatprep.subr.mxu0 0.0
    %639 = vmatpush1.msra.mxu0 0.0
    %640 = vmatprep.subr.mxu0 0.0
    %641 = vmatpush1.msra.mxu0 0.0
    %642 = vmatprep.subr.mxu0 0.0
    %643 = vmatpush1.msra.mxu0 0.0
    %644 = vmatprep.subr.mxu0 0.0
    %645 = vmatpush1.msra.mxu0 0.0
    %646 = vmatprep.subr.mxu0 0.0
    %647 = vmatpush1.msra.mxu0 0.0
    %648 = vmatprep.subr.mxu0 0.0
    %649 = vmatpush1.msra.mxu0 0.0
    %650 = vmatprep.mubr.f32.mxu0 0.0
    %651 = vmatmul.mubr.f32.gmra.mrb[0].mxu0 %v575
    %v652 = vpop.f32.mrb[0].mxu0
    %v653 = vadd.f32 0.0, %v652
    %v654 = vpop.f32.mrb[0].mxu0
    %655 = vmatprep.mubr.f32.mxu0 0.0
    %656 = vmatmul.mubr.f32.gmra.mrb[0].mxu0 %v578
    %v657 = vpop.f32.mrb[0].mxu0
    %v658 = vadd.f32 0.0, %v657
    %v659 = vpop.f32.mrb[0].mxu0
    %660 = vmatprep.mubr.f32.mxu0 0.0
    %661 = vmatmul.mubr.f32.gmra.mrb[0].mxu0 %v581
    %v662 = vpop.f32.mrb[0].mxu0
    %v663 = vadd.f32 0.0, %v662
    %v664 = vpop.f32.mrb[0].mxu0
    %665 = vmatprep.mubr.f32.mxu0 0.0
    %666 = vmatmul.mubr.f32.gmra.mrb[0].mxu0 %v584
    %v667 = vpop.f32.mrb[0].mxu0
    %v668 = vadd.f32 0.0, %v667
    %v669 = vpop.f32.mrb[0].mxu0
    %670 = vdwg.mxu0
    %v672 = vsel %vm185, %v173, 0
    %v675 = vsel %vm185, %v174, 0
    %v678 = vsel %vm185, %v175, 0
    %v681 = vsel %vm185, %v176, 0
    %683 = vmatprep.subr.mxu0 0.0
    %684 = vmatpush1.msra.mxu0 %v54
    %685 = vmatprep.subr.mxu0 0.0
    %686 = vmatpush1.msra.mxu0 0.0
    %687 = vmatprep.subr.mxu0 0.0
    %688 = vmatpush1.msra.mxu0 0.0
    %689 = vmatprep.subr.mxu0 0.0
    %690 = vmatpush1.msra.mxu0 0.0
    %691 = vmatprep.subr.mxu0 0.0
    %692 = vmatpush1.msra.mxu0 0.0
    %693 = vmatprep.subr.mxu0 0.0
    %694 = vmatpush1.msra.mxu0 0.0
    %695 = vmatprep.subr.mxu0 0.0
    %696 = vmatpush1.msra.mxu0 0.0
    %697 = vmatprep.subr.mxu0 0.0
    %698 = vmatpush1.msra.mxu0 0.0
    %699 = vmatprep.subr.mxu0 0.0
    %700 = vmatpush1.msra.mxu0 0.0
    %701 = vmatprep.subr.mxu0 0.0
    %702 = vmatpush1.msra.mxu0 0.0
    %703 = vmatprep.subr.mxu0 0.0
    %704 = vmatpush1.msra.mxu0 0.0
    %705 = vmatprep.subr.mxu0 0.0
    %706 = vmatpush1.msra.mxu0 0.0
    %707 = vmatprep.subr.mxu0 0.0
    %708 = vmatpush1.msra.mxu0 0.0
    %709 = vmatprep.subr.mxu0 0.0
    %710 = vmatpush1.msra.mxu0 0.0
    %711 = vmatprep.subr.mxu0 0.0
    %712 = vmatpush1.msra.mxu0 0.0
    %713 = vmatprep.subr.mxu0 0.0
    %714 = vmatpush1.msra.mxu0 0.0
    %715 = vmatprep.subr.mxu0 0.0
    %716 = vmatpush1.msra.mxu0 0.0
    %717 = vmatprep.subr.mxu0 0.0
    %718 = vmatpush1.msra.mxu0 0.0
    %719 = vmatprep.subr.mxu0 0.0
    %720 = vmatpush1.msra.mxu0 0.0
    %721 = vmatprep.subr.mxu0 0.0
    %722 = vmatpush1.msra.mxu0 0.0
    %723 = vmatprep.subr.mxu0 0.0
    %724 = vmatpush1.msra.mxu0 0.0
    %725 = vmatprep.subr.mxu0 0.0
    %726 = vmatpush1.msra.mxu0 0.0
    %727 = vmatprep.subr.mxu0 0.0
    %728 = vmatpush1.msra.mxu0 0.0
    %729 = vmatprep.subr.mxu0 0.0
    %730 = vmatpush1.msra.mxu0 0.0
    %731 = vmatprep.subr.mxu0 0.0
    %732 = vmatpush1.msra.mxu0 0.0
    %733 = vmatprep.subr.mxu0 0.0
    %734 = vmatpush1.msra.mxu0 0.0
    %735 = vmatprep.subr.mxu0 0.0
    %736 = vmatpush1.msra.mxu0 0.0
    %737 = vmatprep.subr.mxu0 0.0
    %738 = vmatpush1.msra.mxu0 0.0
    %739 = vmatprep.subr.mxu0 0.0
    %740 = vmatpush1.msra.mxu0 0.0
    %741 = vmatprep.subr.mxu0 0.0
    %742 = vmatpush1.msra.mxu0 0.0
    %743 = vmatprep.subr.mxu0 0.0
    %744 = vmatpush1.msra.mxu0 0.0
    %745 = vmatprep.subr.mxu0 0.0
    %746 = vmatpush1.msra.mxu0 0.0
    %747 = vmatprep.mubr.f32.mxu0 0.0
    %748 = vmatmul.mubr.f32.gmra.mrb[0].mxu0 %v672
    %v749 = vpop.f32.mrb[0].mxu0
    %v750 = vadd.f32 0.0, %v749
    %v751 = vpop.f32.mrb[0].mxu0
    %752 = vmatprep.mubr.f32.mxu0 0.0
    %753 = vmatmul.mubr.f32.gmra.mrb[0].mxu0 %v675
    %v754 = vpop.f32.mrb[0].mxu0
    %v755 = vadd.f32 0.0, %v754
    %v756 = vpop.f32.mrb[0].mxu0
    %757 = vmatprep.mubr.f32.mxu0 0.0
    %758 = vmatmul.mubr.f32.gmra.mrb[0].mxu0 %v678
    %v759 = vpop.f32.mrb[0].mxu0
    %v760 = vadd.f32 0.0, %v759
    %v761 = vpop.f32.mrb[0].mxu0
    %762 = vmatprep.mubr.f32.mxu0 0.0
    %763 = vmatmul.mubr.f32.gmra.mrb[0].mxu0 %v681
    %v764 = vpop.f32.mrb[0].mxu0
    %v765 = vadd.f32 0.0, %v764
    %v766 = vpop.f32.mrb[0].mxu0
    %767 = vdwg.mxu0
    %v769 = vsel %vm185, %v177, 0
    %v772 = vsel %vm185, %v178, 0
    %v775 = vsel %vm185, %v179, 0
    %v778 = vsel %vm185, %v180, 0
    %780 = vmatprep.subr.mxu0 0.0
    %781 = vmatpush1.msra.mxu0 %v55
    %782 = vmatprep.subr.mxu0 0.0
    %783 = vmatpush1.msra.mxu0 0.0
    %784 = vmatprep.subr.mxu0 0.0
    %785 = vmatpush1.msra.mxu0 0.0
    %786 = vmatprep.subr.mxu0 0.0
    %787 = vmatpush1.msra.mxu0 0.0
    %788 = vmatprep.subr.mxu0 0.0
    %789 = vmatpush1.msra.mxu0 0.0
    %790 = vmatprep.subr.mxu0 0.0
    %791 = vmatpush1.msra.mxu0 0.0
    %792 = vmatprep.subr.mxu0 0.0
    %793 = vmatpush1.msra.mxu0 0.0
    %794 = vmatprep.subr.mxu0 0.0
    %795 = vmatpush1.msra.mxu0 0.0
    %796 = vmatprep.subr.mxu0 0.0
    %797 = vmatpush1.msra.mxu0 0.0
    %798 = vmatprep.subr.mxu0 0.0
    %799 = vmatpush1.msra.mxu0 0.0
    %800 = vmatprep.subr.mxu0 0.0
    %801 = vmatpush1.msra.mxu0 0.0
    %802 = vmatprep.subr.mxu0 0.0
    %803 = vmatpush1.msra.mxu0 0.0
    %804 = vmatprep.subr.mxu0 0.0
    %805 = vmatpush1.msra.mxu0 0.0
    %806 = vmatprep.subr.mxu0 0.0
    %807 = vmatpush1.msra.mxu0 0.0
    %808 = vmatprep.subr.mxu0 0.0
    %809 = vmatpush1.msra.mxu0 0.0
    %810 = vmatprep.subr.mxu0 0.0
    %811 = vmatpush1.msra.mxu0 0.0
    %812 = vmatprep.subr.mxu0 0.0
    %813 = vmatpush1.msra.mxu0 0.0
    %814 = vmatprep.subr.mxu0 0.0
    %815 = vmatpush1.msra.mxu0 0.0
    %816 = vmatprep.subr.mxu0 0.0
    %817 = vmatpush1.msra.mxu0 0.0
    %818 = vmatprep.subr.mxu0 0.0
    %819 = vmatpush1.msra.mxu0 0.0
    %820 = vmatprep.subr.mxu0 0.0
    %821 = vmatpush1.msra.mxu0 0.0
    %822 = vmatprep.subr.mxu0 0.0
    %823 = vmatpush1.msra.mxu0 0.0
    %824 = vmatprep.subr.mxu0 0.0
    %825 = vmatpush1.msra.mxu0 0.0
    %826 = vmatprep.subr.mxu0 0.0
    %827 = vmatpush1.msra.mxu0 0.0
    %828 = vmatprep.subr.mxu0 0.0
    %829 = vmatpush1.msra.mxu0 0.0
    %830 = vmatprep.subr.mxu0 0.0
    %831 = vmatpush1.msra.mxu0 0.0
    %832 = vmatprep.subr.mxu0 0.0
    %833 = vmatpush1.msra.mxu0 0.0
    %834 = vmatprep.subr.mxu0 0.0
    %835 = vmatpush1.msra.mxu0 0.0
    %836 = vmatprep.subr.mxu0 0.0
    %837 = vmatpush1.msra.mxu0 0.0
    %838 = vmatprep.subr.mxu0 0.0
    %839 = vmatpush1.msra.mxu0 0.0
    %840 = vmatprep.subr.mxu0 0.0
    %841 = vmatpush1.msra.mxu0 0.0
    %842 = vmatprep.subr.mxu0 0.0
    %843 = vmatpush1.msra.mxu0 0.0
    %844 = vmatprep.mubr.f32.mxu0 0.0
    %845 = vmatmul.mubr.f32.gmra.mrb[0].mxu0 %v769
    %v846 = vpop.f32.mrb[0].mxu0
    %v847 = vadd.f32 0.0, %v846
    %v848 = vpop.f32.mrb[0].mxu0
    %849 = vmatprep.mubr.f32.mxu0 0.0
    %850 = vmatmul.mubr.f32.gmra.mrb[0].mxu0 %v772
    %v851 = vpop.f32.mrb[0].mxu0
    %v852 = vadd.f32 0.0, %v851
    %v853 = vpop.f32.mrb[0].mxu0
    %854 = vmatprep.mubr.f32.mxu0 0.0
    %855 = vmatmul.mubr.f32.gmra.mrb[0].mxu0 %v775
    %v856 = vpop.f32.mrb[0].mxu0
    %v857 = vadd.f32 0.0, %v856
    %v858 = vpop.f32.mrb[0].mxu0
    %859 = vmatprep.mubr.f32.mxu0 0.0
    %860 = vmatmul.mubr.f32.gmra.mrb[0].mxu0 %v778
    %v861 = vpop.f32.mrb[0].mxu0
    %v862 = vadd.f32 0.0, %v861
    %v863 = vpop.f32.mrb[0].mxu0
    %864 = vdwg.mxu0
    %v866 = vsel %vm185, %v181, 0
    %v869 = vsel %vm185, %v182, 0
    %v872 = vsel %vm185, %v183, 0
    %v875 = vsel %vm185, %v184, 0
    %877 = vmatprep.subr.mxu0 0.0
    %878 = vmatpush1.msra.mxu0 %v56
    %879 = vmatprep.subr.mxu0 0.0
    %880 = vmatpush1.msra.mxu0 0.0
    %881 = vmatprep.subr.mxu0 0.0
    %882 = vmatpush1.msra.mxu0 0.0
    %883 = vmatprep.subr.mxu0 0.0
    %884 = vmatpush1.msra.mxu0 0.0
    %885 = vmatprep.subr.mxu0 0.0
    %886 = vmatpush1.msra.mxu0 0.0
    %887 = vmatprep.subr.mxu0 0.0
    %888 = vmatpush1.msra.mxu0 0.0
    %889 = vmatprep.subr.mxu0 0.0
    %890 = vmatpush1.msra.mxu0 0.0
    %891 = vmatprep.subr.mxu0 0.0
    %892 = vmatpush1.msra.mxu0 0.0
    %893 = vmatprep.subr.mxu0 0.0
    %894 = vmatpush1.msra.mxu0 0.0
    %895 = vmatprep.subr.mxu0 0.0
    %896 = vmatpush1.msra.mxu0 0.0
    %897 = vmatprep.subr.mxu0 0.0
    %898 = vmatpush1.msra.mxu0 0.0
    %899 = vmatprep.subr.mxu0 0.0
    %900 = vmatpush1.msra.mxu0 0.0
    %901 = vmatprep.subr.mxu0 0.0
    %902 = vmatpush1.msra.mxu0 0.0
    %903 = vmatprep.subr.mxu0 0.0
    %904 = vmatpush1.msra.mxu0 0.0
    %905 = vmatprep.subr.mxu0 0.0
    %906 = vmatpush1.msra.mxu0 0.0
    %907 = vmatprep.subr.mxu0 0.0
    %908 = vmatpush1.msra.mxu0 0.0
    %909 = vmatprep.subr.mxu0 0.0
    %910 = vmatpush1.msra.mxu0 0.0
    %911 = vmatprep.subr.mxu0 0.0
    %912 = vmatpush1.msra.mxu0 0.0
    %913 = vmatprep.subr.mxu0 0.0
    %914 = vmatpush1.msra.mxu0 0.0
    %915 = vmatprep.subr.mxu0 0.0
    %916 = vmatpush1.msra.mxu0 0.0
    %917 = vmatprep.subr.mxu0 0.0
    %918 = vmatpush1.msra.mxu0 0.0
    %919 = vmatprep.subr.mxu0 0.0
    %920 = vmatpush1.msra.mxu0 0.0
    %921 = vmatprep.subr.mxu0 0.0
    %922 = vmatpush1.msra.mxu0 0.0
    %923 = vmatprep.subr.mxu0 0.0
    %924 = vmatpush1.msra.mxu0 0.0
    %925 = vmatprep.subr.mxu0 0.0
    %926 = vmatpush1.msra.mxu0 0.0
    %927 = vmatprep.subr.mxu0 0.0
    %928 = vmatpush1.msra.mxu0 0.0
    %929 = vmatprep.subr.mxu0 0.0
    %930 = vmatpush1.msra.mxu0 0.0
    %931 = vmatprep.subr.mxu0 0.0
    %932 = vmatpush1.msra.mxu0 0.0
    %933 = vmatprep.subr.mxu0 0.0
    %934 = vmatpush1.msra.mxu0 0.0
    %935 = vmatprep.subr.mxu0 0.0
    %936 = vmatpush1.msra.mxu0 0.0
    %937 = vmatprep.subr.mxu0 0.0
    %938 = vmatpush1.msra.mxu0 0.0
    %939 = vmatprep.subr.mxu0 0.0
    %940 = vmatpush1.msra.mxu0 0.0
    %941 = vmatprep.mubr.f32.mxu0 0.0
    %942 = vmatmul.mubr.f32.gmra.mrb[0].mxu0 %v866
    %v943 = vpop.f32.mrb[0].mxu0
    %v944 = vadd.f32 0.0, %v943
    %v945 = vpop.f32.mrb[0].mxu0
    %946 = vmatprep.mubr.f32.mxu0 0.0
    %947 = vmatmul.mubr.f32.gmra.mrb[0].mxu0 %v869
    %v948 = vpop.f32.mrb[0].mxu0
    %v949 = vadd.f32 0.0, %v948
    %v950 = vpop.f32.mrb[0].mxu0
    %951 = vmatprep.mubr.f32.mxu0 0.0
    %952 = vmatmul.mubr.f32.gmra.mrb[0].mxu0 %v872
    %v953 = vpop.f32.mrb[0].mxu0
    %v954 = vadd.f32 0.0, %v953
    %v955 = vpop.f32.mrb[0].mxu0
    %956 = vmatprep.mubr.f32.mxu0 0.0
    %957 = vmatmul.mubr.f32.gmra.mrb[0].mxu0 %v875
    %v958 = vpop.f32.mrb[0].mxu0
    %v959 = vadd.f32 0.0, %v958
    %v960 = vpop.f32.mrb[0].mxu0
    %961 = vdwg.mxu0
    %v970 = vlaneseq
    %v971 = vshrl.u32 %v970, 7
    %v972 = vsub.s32 0, %v971
    %v973 = vrot.slane %v65, %v972
    %v974 = vlaneseq
    %v975 = vshrl.u32 %v974, 7
    %v976 = vsub.s32 0, %v975
    %v977 = vrot.slane %v66, %v976
    %v978 = vlaneseq
    %v979 = vshrl.u32 %v978, 7
    %v980 = vsub.s32 0, %v979
    %v981 = vrot.slane %v67, %v980
    %v982 = vlaneseq
    %v983 = vshrl.u32 %v982, 7
    %v984 = vsub.s32 0, %v983
    %v985 = vrot.slane %v68, %v984
    %v986 = vlaneseq
    %v987 = vshrl.u32 %v986, 7
    %v988 = vsub.s32 0, %v987
    %v989 = vrot.slane %v69, %v988
    %v990 = vlaneseq
    %v991 = vshrl.u32 %v990, 7
    %v992 = vsub.s32 0, %v991
    %v993 = vrot.slane %v70, %v992
    %v994 = vlaneseq
    %v995 = vshrl.u32 %v994, 7
    %v996 = vsub.s32 0, %v995
    %v997 = vrot.slane %v71, %v996
    %v998 = vlaneseq
    %v999 = vshrl.u32 %v998, 7
    %v1000 = vsub.s32 0, %v999
    %v1001 = vrot.slane %v72, %v1000
    %v1010 = vmul.f32 %v265, %v973
    %v1011 = vmul.f32 %v270, %v973
    %v1012 = vmul.f32 %v275, %v973
    %v1013 = vmul.f32 %v280, %v973
    %v1014 = vmul.f32 %v362, %v977
    %v1015 = vmul.f32 %v367, %v977
    %v1016 = vmul.f32 %v372, %v977
    %v1017 = vmul.f32 %v377, %v977
    %v1018 = vmul.f32 %v459, %v981
    %v1019 = vmul.f32 %v464, %v981
    %v1020 = vmul.f32 %v469, %v981
    %v1021 = vmul.f32 %v474, %v981
    %v1022 = vmul.f32 %v556, %v985
    %v1023 = vmul.f32 %v561, %v985
    %v1024 = vmul.f32 %v566, %v985
    %v1025 = vmul.f32 %v571, %v985
    %v1026 = vmul.f32 %v653, %v989
    %v1027 = vmul.f32 %v658, %v989
    %v1028 = vmul.f32 %v663, %v989
    %v1029 = vmul.f32 %v668, %v989
    %v1030 = vmul.f32 %v750, %v993
    %v1031 = vmul.f32 %v755, %v993
    %v1032 = vmul.f32 %v760, %v993
    %v1033 = vmul.f32 %v765, %v993
    %v1034 = vmul.f32 %v847, %v997
    %v1035 = vmul.f32 %v852, %v997
    %v1036 = vmul.f32 %v857, %v997
    %v1037 = vmul.f32 %v862, %v997
    %v1038 = vmul.f32 %v944, %v1001
    %v1039 = vmul.f32 %v949, %v1001
    %v1040 = vmul.f32 %v954, %v1001
    %v1041 = vmul.f32 %v959, %v1001
    %1043 = vset.pattern.permute.xlu0 0
    %1044 = vperm.xlu0 %1043, %v77
    %v1045 = vpop.permute.xlu0 %1044
    %1048 = vset.pattern.permute.xlu0 0
    %1049 = vperm.xlu0 %1048, %v78
    %v1050 = vpop.permute.xlu0 %1049
    %1053 = vset.pattern.permute.xlu0 0
    %1054 = vperm.xlu0 %1053, %v79
    %v1055 = vpop.permute.xlu0 %1054
    %1058 = vset.pattern.permute.xlu0 0
    %1059 = vperm.xlu0 %1058, %v80
    %v1060 = vpop.permute.xlu0 %1059
    %v1062 = vadd.f32 %v1010, %v1045
    %v1063 = vadd.f32 %v1011, %v1050
    %v1064 = vadd.f32 %v1012, %v1055
    %v1065 = vadd.f32 %v1013, %v1060
    %v1066 = vadd.f32 %v1014, %v1045
    %v1067 = vadd.f32 %v1015, %v1050
    %v1068 = vadd.f32 %v1016, %v1055
    %v1069 = vadd.f32 %v1017, %v1060
    %v1070 = vadd.f32 %v1018, %v1045
    %v1071 = vadd.f32 %v1019, %v1050
    %v1072 = vadd.f32 %v1020, %v1055
    %v1073 = vadd.f32 %v1021, %v1060
    %v1074 = vadd.f32 %v1022, %v1045
    %v1075 = vadd.f32 %v1023, %v1050
    %v1076 = vadd.f32 %v1024, %v1055
    %v1077 = vadd.f32 %v1025, %v1060
    %v1078 = vadd.f32 %v1026, %v1045
    %v1079 = vadd.f32 %v1027, %v1050
    %v1080 = vadd.f32 %v1028, %v1055
    %v1081 = vadd.f32 %v1029, %v1060
    %v1082 = vadd.f32 %v1030, %v1045
    %v1083 = vadd.f32 %v1031, %v1050
    %v1084 = vadd.f32 %v1032, %v1055
    %v1085 = vadd.f32 %v1033, %v1060
    %v1086 = vadd.f32 %v1034, %v1045
    %v1087 = vadd.f32 %v1035, %v1050
    %v1088 = vadd.f32 %v1036, %v1055
    %v1089 = vadd.f32 %v1037, %v1060
    %v1090 = vadd.f32 %v1038, %v1045
    %v1091 = vadd.f32 %v1039, %v1050
    %v1092 = vadd.f32 %v1040, %v1055
    %v1093 = vadd.f32 %v1041, %v1060
    %v1094 = vmax.f32 %v1062, 0.0
    %v1095 = vmax.f32 %v1063, 0.0
    %v1096 = vmax.f32 %v1064, 0.0
    %v1097 = vmax.f32 %v1065, 0.0
    %v1098 = vmax.f32 %v1066, 0.0
    %v1099 = vmax.f32 %v1067, 0.0
    %v1100 = vmax.f32 %v1068, 0.0
    %v1101 = vmax.f32 %v1069, 0.0
    %v1102 = vmax.f32 %v1070, 0.0
    %v1103 = vmax.f32 %v1071, 0.0
    %v1104 = vmax.f32 %v1072, 0.0
    %v1105 = vmax.f32 %v1073, 0.0
    %v1106 = vmax.f32 %v1074, 0.0
    %v1107 = vmax.f32 %v1075, 0.0
    %v1108 = vmax.f32 %v1076, 0.0
    %v1109 = vmax.f32 %v1077, 0.0
    %v1110 = vmax.f32 %v1078, 0.0
    %v1111 = vmax.f32 %v1079, 0.0
    %v1112 = vmax.f32 %v1080, 0.0
    %v1113 = vmax.f32 %v1081, 0.0
    %v1114 = vmax.f32 %v1082, 0.0
    %v1115 = vmax.f32 %v1083, 0.0
    %v1116 = vmax.f32 %v1084, 0.0
    %v1117 = vmax.f32 %v1085, 0.0
    %v1118 = vmax.f32 %v1086, 0.0
    %v1119 = vmax.f32 %v1087, 0.0
    %v1120 = vmax.f32 %v1088, 0.0
    %v1121 = vmax.f32 %v1089, 0.0
    %v1122 = vmax.f32 %v1090, 0.0
    %v1123 = vmax.f32 %v1091, 0.0
    %v1124 = vmax.f32 %v1092, 0.0
    %v1125 = vmax.f32 %v1093, 0.0
    %v1126 = vld [vmem:[%s5] sm:$0xff]
    %v1127 = vld [vmem:[%s5 + $0x8] sm:$0xff]
    %v1128 = vld [vmem:[%s5 + $0x10] sm:$0xff]
    %v1129 = vld [vmem:[%s5 + $0x18] sm:$0xff]
    %vm1130 = vcmask 261120
    %v1132 = vsel %vm1130, %v1126, 0
    %v1135 = vsel %vm1130, %v1127, 0
    %v1138 = vsel %vm1130, %v1128, 0
    %v1141 = vsel %vm1130, %v1129, 0
    %1143 = vmatprep.subr.mxu0 0.0
    %1144 = vmatpush1.msra.mxu0 %v1094
    %1145 = vmatprep.subr.mxu0 0.0
    %1146 = vmatpush1.msra.mxu0 %v1095
    %1147 = vmatprep.subr.mxu0 0.0
    %1148 = vmatpush1.msra.mxu0 %v1096
    %1149 = vmatprep.subr.mxu0 0.0
    %1150 = vmatpush1.msra.mxu0 %v1097
    %1151 = vmatprep.subr.mxu0 0.0
    %1152 = vmatpush1.msra.mxu0 0.0
    %1153 = vmatprep.subr.mxu0 0.0
    %1154 = vmatpush1.msra.mxu0 0.0
    %1155 = vmatprep.subr.mxu0 0.0
    %1156 = vmatpush1.msra.mxu0 0.0
    %1157 = vmatprep.subr.mxu0 0.0
    %1158 = vmatpush1.msra.mxu0 0.0
    %1159 = vmatprep.subr.mxu0 0.0
    %1160 = vmatpush1.msra.mxu0 0.0
    %1161 = vmatprep.subr.mxu0 0.0
    %1162 = vmatpush1.msra.mxu0 0.0
    %1163 = vmatprep.subr.mxu0 0.0
    %1164 = vmatpush1.msra.mxu0 0.0
    %1165 = vmatprep.subr.mxu0 0.0
    %1166 = vmatpush1.msra.mxu0 0.0
    %1167 = vmatprep.subr.mxu0 0.0
    %1168 = vmatpush1.msra.mxu0 0.0
    %1169 = vmatprep.subr.mxu0 0.0
    %1170 = vmatpush1.msra.mxu0 0.0
    %1171 = vmatprep.subr.mxu0 0.0
    %1172 = vmatpush1.msra.mxu0 0.0
    %1173 = vmatprep.subr.mxu0 0.0
    %1174 = vmatpush1.msra.mxu0 0.0
    %1175 = vmatprep.subr.mxu0 0.0
    %1176 = vmatpush1.msra.mxu0 0.0
    %1177 = vmatprep.subr.mxu0 0.0
    %1178 = vmatpush1.msra.mxu0 0.0
    %1179 = vmatprep.subr.mxu0 0.0
    %1180 = vmatpush1.msra.mxu0 0.0
    %1181 = vmatprep.subr.mxu0 0.0
    %1182 = vmatpush1.msra.mxu0 0.0
    %1183 = vmatprep.subr.mxu0 0.0
    %1184 = vmatpush1.msra.mxu0 0.0
    %1185 = vmatprep.subr.mxu0 0.0
    %1186 = vmatpush1.msra.mxu0 0.0
    %1187 = vmatprep.subr.mxu0 0.0
    %1188 = vmatpush1.msra.mxu0 0.0
    %1189 = vmatprep.subr.mxu0 0.0
    %1190 = vmatpush1.msra.mxu0 0.0
    %1191 = vmatprep.subr.mxu0 0.0
    %1192 = vmatpush1.msra.mxu0 0.0
    %1193 = vmatprep.subr.mxu0 0.0
    %1194 = vmatpush1.msra.mxu0 0.0
    %1195 = vmatprep.subr.mxu0 0.0
    %1196 = vmatpush1.msra.mxu0 0.0
    %1197 = vmatprep.subr.mxu0 0.0
    %1198 = vmatpush1.msra.mxu0 0.0
    %1199 = vmatprep.subr.mxu0 0.0
    %1200 = vmatpush1.msra.mxu0 0.0
    %1201 = vmatprep.subr.mxu0 0.0
    %1202 = vmatpush1.msra.mxu0 0.0
    %1203 = vmatprep.subr.mxu0 0.0
    %1204 = vmatpush1.msra.mxu0 0.0
    %1205 = vmatprep.subr.mxu0 0.0
    %1206 = vmatpush1.msra.mxu0 0.0
    %1207 = vmatprep.mubr.f32.mxu0 0.0
    %1208 = vmatmul.mubr.f32.gmra.mrb[0].mxu0 %v1132
    %v1209 = vpop.f32.mrb[0].mxu0
    %v1210 = vadd.f32 0.0, %v1209
    %v1211 = vpop.f32.mrb[0].mxu0
    %1212 = vmatprep.mubr.f32.mxu0 0.0
    %1213 = vmatmul.mubr.f32.gmra.mrb[0].mxu0 %v1135
    %v1214 = vpop.f32.mrb[0].mxu0
    %v1215 = vadd.f32 0.0, %v1214
    %v1216 = vpop.f32.mrb[0].mxu0
    %1217 = vmatprep.mubr.f32.mxu0 0.0
    %1218 = vmatmul.mubr.f32.gmra.mrb[0].mxu0 %v1138
    %v1219 = vpop.f32.mrb[0].mxu0
    %v1220 = vadd.f32 0.0, %v1219
    %v1221 = vpop.f32.mrb[0].mxu0
    %1222 = vmatprep.mubr.f32.mxu0 0.0
    %1223 = vmatmul.mubr.f32.gmra.mrb[0].mxu0 %v1141
    %v1224 = vpop.f32.mrb[0].mxu0
    %v1225 = vadd.f32 0.0, %v1224
    %v1226 = vpop.f32.mrb[0].mxu0
    %1227 = vdwg.mxu0
    %1228 = vmatprep.subr.mxu0 0.0
    %1229 = vmatpush1.msra.mxu0 %v1098
    %1230 = vmatprep.subr.mxu0 0.0
    %1231 = vmatpush1.msra.mxu0 %v1099
    %1232 = vmatprep.subr.mxu0 0.0
    %1233 = vmatpush1.msra.mxu0 %v1100
    %1234 = vmatprep.subr.mxu0 0.0
    %1235 = vmatpush1.msra.mxu0 %v1101
    %1236 = vmatprep.subr.mxu0 0.0
    %1237 = vmatpush1.msra.mxu0 0.0
    %1238 = vmatprep.subr.mxu0 0.0
    %1239 = vmatpush1.msra.mxu0 0.0
    %1240 = vmatprep.subr.mxu0 0.0
    %1241 = vmatpush1.msra.mxu0 0.0
    %1242 = vmatprep.subr.mxu0 0.0
    %1243 = vmatpush1.msra.mxu0 0.0
    %1244 = vmatprep.subr.mxu0 0.0
    %1245 = vmatpush1.msra.mxu0 0.0
    %1246 = vmatprep.subr.mxu0 0.0
    %1247 = vmatpush1.msra.mxu0 0.0
    %1248 = vmatprep.subr.mxu0 0.0
    %1249 = vmatpush1.msra.mxu0 0.0
    %1250 = vmatprep.subr.mxu0 0.0
    %1251 = vmatpush1.msra.mxu0 0.0
    %1252 = vmatprep.subr.mxu0 0.0
    %1253 = vmatpush1.msra.mxu0 0.0
    %1254 = vmatprep.subr.mxu0 0.0
    %1255 = vmatpush1.msra.mxu0 0.0
    %1256 = vmatprep.subr.mxu0 0.0
    %1257 = vmatpush1.msra.mxu0 0.0
    %1258 = vmatprep.subr.mxu0 0.0
    %1259 = vmatpush1.msra.mxu0 0.0
    %1260 = vmatprep.subr.mxu0 0.0
    %1261 = vmatpush1.msra.mxu0 0.0
    %1262 = vmatprep.subr.mxu0 0.0
    %1263 = vmatpush1.msra.mxu0 0.0
    %1264 = vmatprep.subr.mxu0 0.0
    %1265 = vmatpush1.msra.mxu0 0.0
    %1266 = vmatprep.subr.mxu0 0.0
    %1267 = vmatpush1.msra.mxu0 0.0
    %1268 = vmatprep.subr.mxu0 0.0
    %1269 = vmatpush1.msra.mxu0 0.0
    %1270 = vmatprep.subr.mxu0 0.0
    %1271 = vmatpush1.msra.mxu0 0.0
    %1272 = vmatprep.subr.mxu0 0.0
    %1273 = vmatpush1.msra.mxu0 0.0
    %1274 = vmatprep.subr.mxu0 0.0
    %1275 = vmatpush1.msra.mxu0 0.0
    %1276 = vmatprep.subr.mxu0 0.0
    %1277 = vmatpush1.msra.mxu0 0.0
    %1278 = vmatprep.subr.mxu0 0.0
    %1279 = vmatpush1.msra.mxu0 0.0
    %1280 = vmatprep.subr.mxu0 0.0
    %1281 = vmatpush1.msra.mxu0 0.0
    %1282 = vmatprep.subr.mxu0 0.0
    %1283 = vmatpush1.msra.mxu0 0.0
    %1284 = vmatprep.subr.mxu0 0.0
    %1285 = vmatpush1.msra.mxu0 0.0
    %1286 = vmatprep.subr.mxu0 0.0
    %1287 = vmatpush1.msra.mxu0 0.0
    %1288 = vmatprep.subr.mxu0 0.0
    %1289 = vmatpush1.msra.mxu0 0.0
    %1290 = vmatprep.subr.mxu0 0.0
    %1291 = vmatpush1.msra.mxu0 0.0
    %1292 = vmatprep.mubr.f32.mxu0 0.0
    %1293 = vmatmul.mubr.f32.gmra.mrb[0].mxu0 %v1132
    %v1294 = vpop.f32.mrb[0].mxu0
    %v1295 = vadd.f32 0.0, %v1294
    %v1296 = vpop.f32.mrb[0].mxu0
    %1297 = vmatprep.mubr.f32.mxu0 0.0
    %1298 = vmatmul.mubr.f32.gmra.mrb[0].mxu0 %v1135
    %v1299 = vpop.f32.mrb[0].mxu0
    %v1300 = vadd.f32 0.0, %v1299
    %v1301 = vpop.f32.mrb[0].mxu0
    %1302 = vmatprep.mubr.f32.mxu0 0.0
    %1303 = vmatmul.mubr.f32.gmra.mrb[0].mxu0 %v1138
    %v1304 = vpop.f32.mrb[0].mxu0
    %v1305 = vadd.f32 0.0, %v1304
    %v1306 = vpop.f32.mrb[0].mxu0
    %1307 = vmatprep.mubr.f32.mxu0 0.0
    %1308 = vmatmul.mubr.f32.gmra.mrb[0].mxu0 %v1141
    %v1309 = vpop.f32.mrb[0].mxu0
    %v1310 = vadd.f32 0.0, %v1309
    %v1311 = vpop.f32.mrb[0].mxu0
    %1312 = vdwg.mxu0
    %1313 = vmatprep.subr.mxu0 0.0
    %1314 = vmatpush1.msra.mxu0 %v1102
    %1315 = vmatprep.subr.mxu0 0.0
    %1316 = vmatpush1.msra.mxu0 %v1103
    %1317 = vmatprep.subr.mxu0 0.0
    %1318 = vmatpush1.msra.mxu0 %v1104
    %1319 = vmatprep.subr.mxu0 0.0
    %1320 = vmatpush1.msra.mxu0 %v1105
    %1321 = vmatprep.subr.mxu0 0.0
    %1322 = vmatpush1.msra.mxu0 0.0
    %1323 = vmatprep.subr.mxu0 0.0
    %1324 = vmatpush1.msra.mxu0 0.0
    %1325 = vmatprep.subr.mxu0 0.0
    %1326 = vmatpush1.msra.mxu0 0.0
    %1327 = vmatprep.subr.mxu0 0.0
    %1328 = vmatpush1.msra.mxu0 0.0
    %1329 = vmatprep.subr.mxu0 0.0
    %1330 = vmatpush1.msra.mxu0 0.0
    %1331 = vmatprep.subr.mxu0 0.0
    %1332 = vmatpush1.msra.mxu0 0.0
    %1333 = vmatprep.subr.mxu0 0.0
    %1334 = vmatpush1.msra.mxu0 0.0
    %1335 = vmatprep.subr.mxu0 0.0
    %1336 = vmatpush1.msra.mxu0 0.0
    %1337 = vmatprep.subr.mxu0 0.0
    %1338 = vmatpush1.msra.mxu0 0.0
    %1339 = vmatprep.subr.mxu0 0.0
    %1340 = vmatpush1.msra.mxu0 0.0
    %1341 = vmatprep.subr.mxu0 0.0
    %1342 = vmatpush1.msra.mxu0 0.0
    %1343 = vmatprep.subr.mxu0 0.0
    %1344 = vmatpush1.msra.mxu0 0.0
    %1345 = vmatprep.subr.mxu0 0.0
    %1346 = vmatpush1.msra.mxu0 0.0
    %1347 = vmatprep.subr.mxu0 0.0
    %1348 = vmatpush1.msra.mxu0 0.0
    %1349 = vmatprep.subr.mxu0 0.0
    %1350 = vmatpush1.msra.mxu0 0.0
    %1351 = vmatprep.subr.mxu0 0.0
    %1352 = vmatpush1.msra.mxu0 0.0
    %1353 = vmatprep.subr.mxu0 0.0
    %1354 = vmatpush1.msra.mxu0 0.0
    %1355 = vmatprep.subr.mxu0 0.0
    %1356 = vmatpush1.msra.mxu0 0.0
    %1357 = vmatprep.subr.mxu0 0.0
    %1358 = vmatpush1.msra.mxu0 0.0
    %1359 = vmatprep.subr.mxu0 0.0
    %1360 = vmatpush1.msra.mxu0 0.0
    %1361 = vmatprep.subr.mxu0 0.0
    %1362 = vmatpush1.msra.mxu0 0.0
    %1363 = vmatprep.subr.mxu0 0.0
    %1364 = vmatpush1.msra.mxu0 0.0
    %1365 = vmatprep.subr.mxu0 0.0
    %1366 = vmatpush1.msra.mxu0 0.0
    %1367 = vmatprep.subr.mxu0 0.0
    %1368 = vmatpush1.msra.mxu0 0.0
    %1369 = vmatprep.subr.mxu0 0.0
    %1370 = vmatpush1.msra.mxu0 0.0
    %1371 = vmatprep.subr.mxu0 0.0
    %1372 = vmatpush1.msra.mxu0 0.0
    %1373 = vmatprep.subr.mxu0 0.0
    %1374 = vmatpush1.msra.mxu0 0.0
    %1375 = vmatprep.subr.mxu0 0.0
    %1376 = vmatpush1.msra.mxu0 0.0
    %1377 = vmatprep.mubr.f32.mxu0 0.0
    %1378 = vmatmul.mubr.f32.gmra.mrb[0].mxu0 %v1132
    %v1379 = vpop.f32.mrb[0].mxu0
    %v1380 = vadd.f32 0.0, %v1379
    %v1381 = vpop.f32.mrb[0].mxu0
    %1382 = vmatprep.mubr.f32.mxu0 0.0
    %1383 = vmatmul.mubr.f32.gmra.mrb[0].mxu0 %v1135
    %v1384 = vpop.f32.mrb[0].mxu0
    %v1385 = vadd.f32 0.0, %v1384
    %v1386 = vpop.f32.mrb[0].mxu0
    %1387 = vmatprep.mubr.f32.mxu0 0.0
    %1388 = vmatmul.mubr.f32.gmra.mrb[0].mxu0 %v1138
    %v1389 = vpop.f32.mrb[0].mxu0
    %v1390 = vadd.f32 0.0, %v1389
    %v1391 = vpop.f32.mrb[0].mxu0
    %1392 = vmatprep.mubr.f32.mxu0 0.0
    %1393 = vmatmul.mubr.f32.gmra.mrb[0].mxu0 %v1141
    %v1394 = vpop.f32.mrb[0].mxu0
    %v1395 = vadd.f32 0.0, %v1394
    %v1396 = vpop.f32.mrb[0].mxu0
    %1397 = vdwg.mxu0
    %1398 = vmatprep.subr.mxu0 0.0
    %1399 = vmatpush1.msra.mxu0 %v1106
    %1400 = vmatprep.subr.mxu0 0.0
    %1401 = vmatpush1.msra.mxu0 %v1107
    %1402 = vmatprep.subr.mxu0 0.0
    %1403 = vmatpush1.msra.mxu0 %v1108
    %1404 = vmatprep.subr.mxu0 0.0
    %1405 = vmatpush1.msra.mxu0 %v1109
    %1406 = vmatprep.subr.mxu0 0.0
    %1407 = vmatpush1.msra.mxu0 0.0
    %1408 = vmatprep.subr.mxu0 0.0
    %1409 = vmatpush1.msra.mxu0 0.0
    %1410 = vmatprep.subr.mxu0 0.0
    %1411 = vmatpush1.msra.mxu0 0.0
    %1412 = vmatprep.subr.mxu0 0.0
    %1413 = vmatpush1.msra.mxu0 0.0
    %1414 = vmatprep.subr.mxu0 0.0
    %1415 = vmatpush1.msra.mxu0 0.0
    %1416 = vmatprep.subr.mxu0 0.0
    %1417 = vmatpush1.msra.mxu0 0.0
    %1418 = vmatprep.subr.mxu0 0.0
    %1419 = vmatpush1.msra.mxu0 0.0
    %1420 = vmatprep.subr.mxu0 0.0
    %1421 = vmatpush1.msra.mxu0 0.0
    %1422 = vmatprep.subr.mxu0 0.0
    %1423 = vmatpush1.msra.mxu0 0.0
    %1424 = vmatprep.subr.mxu0 0.0
    %1425 = vmatpush1.msra.mxu0 0.0
    %1426 = vmatprep.subr.mxu0 0.0
    %1427 = vmatpush1.msra.mxu0 0.0
    %1428 = vmatprep.subr.mxu0 0.0
    %1429 = vmatpush1.msra.mxu0 0.0
    %1430 = vmatprep.subr.mxu0 0.0
    %1431 = vmatpush1.msra.mxu0 0.0
    %1432 = vmatprep.subr.mxu0 0.0
    %1433 = vmatpush1.msra.mxu0 0.0
    %1434 = vmatprep.subr.mxu0 0.0
    %1435 = vmatpush1.msra.mxu0 0.0
    %1436 = vmatprep.subr.mxu0 0.0
    %1437 = vmatpush1.msra.mxu0 0.0
    %1438 = vmatprep.subr.mxu0 0.0
    %1439 = vmatpush1.msra.mxu0 0.0
    %1440 = vmatprep.subr.mxu0 0.0
    %1441 = vmatpush1.msra.mxu0 0.0
    %1442 = vmatprep.subr.mxu0 0.0
    %1443 = vmatpush1.msra.mxu0 0.0
    %1444 = vmatprep.subr.mxu0 0.0
    %1445 = vmatpush1.msra.mxu0 0.0
    %1446 = vmatprep.subr.mxu0 0.0
    %1447 = vmatpush1.msra.mxu0 0.0
    %1448 = vmatprep.subr.mxu0 0.0
    %1449 = vmatpush1.msra.mxu0 0.0
    %1450 = vmatprep.subr.mxu0 0.0
    %1451 = vmatpush1.msra.mxu0 0.0
    %1452 = vmatprep.subr.mxu0 0.0
    %1453 = vmatpush1.msra.mxu0 0.0
    %1454 = vmatprep.subr.mxu0 0.0
    %1455 = vmatpush1.msra.mxu0 0.0
    %1456 = vmatprep.subr.mxu0 0.0
    %1457 = vmatpush1.msra.mxu0 0.0
    %1458 = vmatprep.subr.mxu0 0.0
    %1459 = vmatpush1.msra.mxu0 0.0
    %1460 = vmatprep.subr.mxu0 0.0
    %1461 = vmatpush1.msra.mxu0 0.0
    %1462 = vmatprep.mubr.f32.mxu0 0.0
    %1463 = vmatmul.mubr.f32.gmra.mrb[0].mxu0 %v1132
    %v1464 = vpop.f32.mrb[0].mxu0
    %v1465 = vadd.f32 0.0, %v1464
    %v1466 = vpop.f32.mrb[0].mxu0
    %1467 = vmatprep.mubr.f32.mxu0 0.0
    %1468 = vmatmul.mubr.f32.gmra.mrb[0].mxu0 %v1135
    %v1469 = vpop.f32.mrb[0].mxu0
    %v1470 = vadd.f32 0.0, %v1469
    %v1471 = vpop.f32.mrb[0].mxu0
    %1472 = vmatprep.mubr.f32.mxu0 0.0
    %1473 = vmatmul.mubr.f32.gmra.mrb[0].mxu0 %v1138
    %v1474 = vpop.f32.mrb[0].mxu0
    %v1475 = vadd.f32 0.0, %v1474
    %v1476 = vpop.f32.mrb[0].mxu0
    %1477 = vmatprep.mubr.f32.mxu0 0.0
    %1478 = vmatmul.mubr.f32.gmra.mrb[0].mxu0 %v1141
    %v1479 = vpop.f32.mrb[0].mxu0
    %v1480 = vadd.f32 0.0, %v1479
    %v1481 = vpop.f32.mrb[0].mxu0
    %1482 = vdwg.mxu0
    %1483 = vmatprep.subr.mxu0 0.0
    %1484 = vmatpush1.msra.mxu0 %v1110
    %1485 = vmatprep.subr.mxu0 0.0
    %1486 = vmatpush1.msra.mxu0 %v1111
    %1487 = vmatprep.subr.mxu0 0.0
    %1488 = vmatpush1.msra.mxu0 %v1112
    %1489 = vmatprep.subr.mxu0 0.0
    %1490 = vmatpush1.msra.mxu0 %v1113
    %1491 = vmatprep.subr.mxu0 0.0
    %1492 = vmatpush1.msra.mxu0 0.0
    %1493 = vmatprep.subr.mxu0 0.0
    %1494 = vmatpush1.msra.mxu0 0.0
    %1495 = vmatprep.subr.mxu0 0.0
    %1496 = vmatpush1.msra.mxu0 0.0
    %1497 = vmatprep.subr.mxu0 0.0
    %1498 = vmatpush1.msra.mxu0 0.0
    %1499 = vmatprep.subr.mxu0 0.0
    %1500 = vmatpush1.msra.mxu0 0.0
    %1501 = vmatprep.subr.mxu0 0.0
    %1502 = vmatpush1.msra.mxu0 0.0
    %1503 = vmatprep.subr.mxu0 0.0
    %1504 = vmatpush1.msra.mxu0 0.0
    %1505 = vmatprep.subr.mxu0 0.0
    %1506 = vmatpush1.msra.mxu0 0.0
    %1507 = vmatprep.subr.mxu0 0.0
    %1508 = vmatpush1.msra.mxu0 0.0
    %1509 = vmatprep.subr.mxu0 0.0
    %1510 = vmatpush1.msra.mxu0 0.0
    %1511 = vmatprep.subr.mxu0 0.0
    %1512 = vmatpush1.msra.mxu0 0.0
    %1513 = vmatprep.subr.mxu0 0.0
    %1514 = vmatpush1.msra.mxu0 0.0
    %1515 = vmatprep.subr.mxu0 0.0
    %1516 = vmatpush1.msra.mxu0 0.0
    %1517 = vmatprep.subr.mxu0 0.0
    %1518 = vmatpush1.msra.mxu0 0.0
    %1519 = vmatprep.subr.mxu0 0.0
    %1520 = vmatpush1.msra.mxu0 0.0
    %1521 = vmatprep.subr.mxu0 0.0
    %1522 = vmatpush1.msra.mxu0 0.0
    %1523 = vmatprep.subr.mxu0 0.0
    %1524 = vmatpush1.msra.mxu0 0.0
    %1525 = vmatprep.subr.mxu0 0.0
    %1526 = vmatpush1.msra.mxu0 0.0
    %1527 = vmatprep.subr.mxu0 0.0
    %1528 = vmatpush1.msra.mxu0 0.0
    %1529 = vmatprep.subr.mxu0 0.0
    %1530 = vmatpush1.msra.mxu0 0.0
    %1531 = vmatprep.subr.mxu0 0.0
    %1532 = vmatpush1.msra.mxu0 0.0
    %1533 = vmatprep.subr.mxu0 0.0
    %1534 = vmatpush1.msra.mxu0 0.0
    %1535 = vmatprep.subr.mxu0 0.0
    %1536 = vmatpush1.msra.mxu0 0.0
    %1537 = vmatprep.subr.mxu0 0.0
    %1538 = vmatpush1.msra.mxu0 0.0
    %1539 = vmatprep.subr.mxu0 0.0
    %1540 = vmatpush1.msra.mxu0 0.0
    %1541 = vmatprep.subr.mxu0 0.0
    %1542 = vmatpush1.msra.mxu0 0.0
    %1543 = vmatprep.subr.mxu0 0.0
    %1544 = vmatpush1.msra.mxu0 0.0
    %1545 = vmatprep.subr.mxu0 0.0
    %1546 = vmatpush1.msra.mxu0 0.0
    %1547 = vmatprep.mubr.f32.mxu0 0.0
    %1548 = vmatmul.mubr.f32.gmra.mrb[0].mxu0 %v1132
    %v1549 = vpop.f32.mrb[0].mxu0
    %v1550 = vadd.f32 0.0, %v1549
    %v1551 = vpop.f32.mrb[0].mxu0
    %1552 = vmatprep.mubr.f32.mxu0 0.0
    %1553 = vmatmul.mubr.f32.gmra.mrb[0].mxu0 %v1135
    %v1554 = vpop.f32.mrb[0].mxu0
    %v1555 = vadd.f32 0.0, %v1554
    %v1556 = vpop.f32.mrb[0].mxu0
    %1557 = vmatprep.mubr.f32.mxu0 0.0
    %1558 = vmatmul.mubr.f32.gmra.mrb[0].mxu0 %v1138
    %v1559 = vpop.f32.mrb[0].mxu0
    %v1560 = vadd.f32 0.0, %v1559
    %v1561 = vpop.f32.mrb[0].mxu0
    %1562 = vmatprep.mubr.f32.mxu0 0.0
    %1563 = vmatmul.mubr.f32.gmra.mrb[0].mxu0 %v1141
    %v1564 = vpop.f32.mrb[0].mxu0
    %v1565 = vadd.f32 0.0, %v1564
    %v1566 = vpop.f32.mrb[0].mxu0
    %1567 = vdwg.mxu0
    %1568 = vmatprep.subr.mxu0 0.0
    %1569 = vmatpush1.msra.mxu0 %v1114
    %1570 = vmatprep.subr.mxu0 0.0
    %1571 = vmatpush1.msra.mxu0 %v1115
    %1572 = vmatprep.subr.mxu0 0.0
    %1573 = vmatpush1.msra.mxu0 %v1116
    %1574 = vmatprep.subr.mxu0 0.0
    %1575 = vmatpush1.msra.mxu0 %v1117
    %1576 = vmatprep.subr.mxu0 0.0
    %1577 = vmatpush1.msra.mxu0 0.0
    %1578 = vmatprep.subr.mxu0 0.0
    %1579 = vmatpush1.msra.mxu0 0.0
    %1580 = vmatprep.subr.mxu0 0.0
    %1581 = vmatpush1.msra.mxu0 0.0
    %1582 = vmatprep.subr.mxu0 0.0
    %1583 = vmatpush1.msra.mxu0 0.0
    %1584 = vmatprep.subr.mxu0 0.0
    %1585 = vmatpush1.msra.mxu0 0.0
    %1586 = vmatprep.subr.mxu0 0.0
    %1587 = vmatpush1.msra.mxu0 0.0
    %1588 = vmatprep.subr.mxu0 0.0
    %1589 = vmatpush1.msra.mxu0 0.0
    %1590 = vmatprep.subr.mxu0 0.0
    %1591 = vmatpush1.msra.mxu0 0.0
    %1592 = vmatprep.subr.mxu0 0.0
    %1593 = vmatpush1.msra.mxu0 0.0
    %1594 = vmatprep.subr.mxu0 0.0
    %1595 = vmatpush1.msra.mxu0 0.0
    %1596 = vmatprep.subr.mxu0 0.0
    %1597 = vmatpush1.msra.mxu0 0.0
    %1598 = vmatprep.subr.mxu0 0.0
    %1599 = vmatpush1.msra.mxu0 0.0
    %1600 = vmatprep.subr.mxu0 0.0
    %1601 = vmatpush1.msra.mxu0 0.0
    %1602 = vmatprep.subr.mxu0 0.0
    %1603 = vmatpush1.msra.mxu0 0.0
    %1604 = vmatprep.subr.mxu0 0.0
    %1605 = vmatpush1.msra.mxu0 0.0
    %1606 = vmatprep.subr.mxu0 0.0
    %1607 = vmatpush1.msra.mxu0 0.0
    %1608 = vmatprep.subr.mxu0 0.0
    %1609 = vmatpush1.msra.mxu0 0.0
    %1610 = vmatprep.subr.mxu0 0.0
    %1611 = vmatpush1.msra.mxu0 0.0
    %1612 = vmatprep.subr.mxu0 0.0
    %1613 = vmatpush1.msra.mxu0 0.0
    %1614 = vmatprep.subr.mxu0 0.0
    %1615 = vmatpush1.msra.mxu0 0.0
    %1616 = vmatprep.subr.mxu0 0.0
    %1617 = vmatpush1.msra.mxu0 0.0
    %1618 = vmatprep.subr.mxu0 0.0
    %1619 = vmatpush1.msra.mxu0 0.0
    %1620 = vmatprep.subr.mxu0 0.0
    %1621 = vmatpush1.msra.mxu0 0.0
    %1622 = vmatprep.subr.mxu0 0.0
    %1623 = vmatpush1.msra.mxu0 0.0
    %1624 = vmatprep.subr.mxu0 0.0
    %1625 = vmatpush1.msra.mxu0 0.0
    %1626 = vmatprep.subr.mxu0 0.0
    %1627 = vmatpush1.msra.mxu0 0.0
    %1628 = vmatprep.subr.mxu0 0.0
    %1629 = vmatpush1.msra.mxu0 0.0
    %1630 = vmatprep.subr.mxu0 0.0
    %1631 = vmatpush1.msra.mxu0 0.0
    %1632 = vmatprep.mubr.f32.mxu0 0.0
    %1633 = vmatmul.mubr.f32.gmra.mrb[0].mxu0 %v1132
    %v1634 = vpop.f32.mrb[0].mxu0
    %v1635 = vadd.f32 0.0, %v1634
    %v1636 = vpop.f32.mrb[0].mxu0
    %1637 = vmatprep.mubr.f32.mxu0 0.0
    %1638 = vmatmul.mubr.f32.gmra.mrb[0].mxu0 %v1135
    %v1639 = vpop.f32.mrb[0].mxu0
    %v1640 = vadd.f32 0.0, %v1639
    %v1641 = vpop.f32.mrb[0].mxu0
    %1642 = vmatprep.mubr.f32.mxu0 0.0
    %1643 = vmatmul.mubr.f32.gmra.mrb[0].mxu0 %v1138
    %v1644 = vpop.f32.mrb[0].mxu0
    %v1645 = vadd.f32 0.0, %v1644
    %v1646 = vpop.f32.mrb[0].mxu0
    %1647 = vmatprep.mubr.f32.mxu0 0.0
    %1648 = vmatmul.mubr.f32.gmra.mrb[0].mxu0 %v1141
    %v1649 = vpop.f32.mrb[0].mxu0
    %v1650 = vadd.f32 0.0, %v1649
    %v1651 = vpop.f32.mrb[0].mxu0
    %1652 = vdwg.mxu0
    %1653 = vmatprep.subr.mxu0 0.0
    %1654 = vmatpush1.msra.mxu0 %v1118
    %1655 = vmatprep.subr.mxu0 0.0
    %1656 = vmatpush1.msra.mxu0 %v1119
    %1657 = vmatprep.subr.mxu0 0.0
    %1658 = vmatpush1.msra.mxu0 %v1120
    %1659 = vmatprep.subr.mxu0 0.0
    %1660 = vmatpush1.msra.mxu0 %v1121
    %1661 = vmatprep.subr.mxu0 0.0
    %1662 = vmatpush1.msra.mxu0 0.0
    %1663 = vmatprep.subr.mxu0 0.0
    %1664 = vmatpush1.msra.mxu0 0.0
    %1665 = vmatprep.subr.mxu0 0.0
    %1666 = vmatpush1.msra.mxu0 0.0
    %1667 = vmatprep.subr.mxu0 0.0
    %1668 = vmatpush1.msra.mxu0 0.0
    %1669 = vmatprep.subr.mxu0 0.0
    %1670 = vmatpush1.msra.mxu0 0.0
    %1671 = vmatprep.subr.mxu0 0.0
    %1672 = vmatpush1.msra.mxu0 0.0
    %1673 = vmatprep.subr.mxu0 0.0
    %1674 = vmatpush1.msra.mxu0 0.0
    %1675 = vmatprep.subr.mxu0 0.0
    %1676 = vmatpush1.msra.mxu0 0.0
    %1677 = vmatprep.subr.mxu0 0.0
    %1678 = vmatpush1.msra.mxu0 0.0
    %1679 = vmatprep.subr.mxu0 0.0
    %1680 = vmatpush1.msra.mxu0 0.0
    %1681 = vmatprep.subr.mxu0 0.0
    %1682 = vmatpush1.msra.mxu0 0.0
    %1683 = vmatprep.subr.mxu0 0.0
    %1684 = vmatpush1.msra.mxu0 0.0
    %1685 = vmatprep.subr.mxu0 0.0
    %1686 = vmatpush1.msra.mxu0 0.0
    %1687 = vmatprep.subr.mxu0 0.0
    %1688 = vmatpush1.msra.mxu0 0.0
    %1689 = vmatprep.subr.mxu0 0.0
    %1690 = vmatpush1.msra.mxu0 0.0
    %1691 = vmatprep.subr.mxu0 0.0
    %1692 = vmatpush1.msra.mxu0 0.0
    %1693 = vmatprep.subr.mxu0 0.0
    %1694 = vmatpush1.msra.mxu0 0.0
    %1695 = vmatprep.subr.mxu0 0.0
    %1696 = vmatpush1.msra.mxu0 0.0
    %1697 = vmatprep.subr.mxu0 0.0
    %1698 = vmatpush1.msra.mxu0 0.0
    %1699 = vmatprep.subr.mxu0 0.0
    %1700 = vmatpush1.msra.mxu0 0.0
    %1701 = vmatprep.subr.mxu0 0.0
    %1702 = vmatpush1.msra.mxu0 0.0
    %1703 = vmatprep.subr.mxu0 0.0
    %1704 = vmatpush1.msra.mxu0 0.0
    %1705 = vmatprep.subr.mxu0 0.0
    %1706 = vmatpush1.msra.mxu0 0.0
    %1707 = vmatprep.subr.mxu0 0.0
    %1708 = vmatpush1.msra.mxu0 0.0
    %1709 = vmatprep.subr.mxu0 0.0
    %1710 = vmatpush1.msra.mxu0 0.0
    %1711 = vmatprep.subr.mxu0 0.0
    %1712 = vmatpush1.msra.mxu0 0.0
    %1713 = vmatprep.subr.mxu0 0.0
    %1714 = vmatpush1.msra.mxu0 0.0
    %1715 = vmatprep.subr.mxu0 0.0
    %1716 = vmatpush1.msra.mxu0 0.0
    %1717 = vmatprep.mubr.f32.mxu0 0.0
    %1718 = vmatmul.mubr.f32.gmra.mrb[0].mxu0 %v1132
    %v1719 = vpop.f32.mrb[0].mxu0
    %v1720 = vadd.f32 0.0, %v1719
    %v1721 = vpop.f32.mrb[0].mxu0
    %1722 = vmatprep.mubr.f32.mxu0 0.0
    %1723 = vmatmul.mubr.f32.gmra.mrb[0].mxu0 %v1135
    %v1724 = vpop.f32.mrb[0].mxu0
    %v1725 = vadd.f32 0.0, %v1724
    %v1726 = vpop.f32.mrb[0].mxu0
    %1727 = vmatprep.mubr.f32.mxu0 0.0
    %1728 = vmatmul.mubr.f32.gmra.mrb[0].mxu0 %v1138
    %v1729 = vpop.f32.mrb[0].mxu0
    %v1730 = vadd.f32 0.0, %v1729
    %v1731 = vpop.f32.mrb[0].mxu0
    %1732 = vmatprep.mubr.f32.mxu0 0.0
    %1733 = vmatmul.mubr.f32.gmra.mrb[0].mxu0 %v1141
    %v1734 = vpop.f32.mrb[0].mxu0
    %v1735 = vadd.f32 0.0, %v1734
    %v1736 = vpop.f32.mrb[0].mxu0
    %1737 = vdwg.mxu0
    %1738 = vmatprep.subr.mxu0 0.0
    %1739 = vmatpush1.msra.mxu0 %v1122
    %1740 = vmatprep.subr.mxu0 0.0
    %1741 = vmatpush1.msra.mxu0 %v1123
    %1742 = vmatprep.subr.mxu0 0.0
    %1743 = vmatpush1.msra.mxu0 %v1124
    %1744 = vmatprep.subr.mxu0 0.0
    %1745 = vmatpush1.msra.mxu0 %v1125
    %1746 = vmatprep.subr.mxu0 0.0
    %1747 = vmatpush1.msra.mxu0 0.0
    %1748 = vmatprep.subr.mxu0 0.0
    %1749 = vmatpush1.msra.mxu0 0.0
    %1750 = vmatprep.subr.mxu0 0.0
    %1751 = vmatpush1.msra.mxu0 0.0
    %1752 = vmatprep.subr.mxu0 0.0
    %1753 = vmatpush1.msra.mxu0 0.0
    %1754 = vmatprep.subr.mxu0 0.0
    %1755 = vmatpush1.msra.mxu0 0.0
    %1756 = vmatprep.subr.mxu0 0.0
    %1757 = vmatpush1.msra.mxu0 0.0
    %1758 = vmatprep.subr.mxu0 0.0
    %1759 = vmatpush1.msra.mxu0 0.0
    %1760 = vmatprep.subr.mxu0 0.0
    %1761 = vmatpush1.msra.mxu0 0.0
    %1762 = vmatprep.subr.mxu0 0.0
    %1763 = vmatpush1.msra.mxu0 0.0
    %1764 = vmatprep.subr.mxu0 0.0
    %1765 = vmatpush1.msra.mxu0 0.0
    %1766 = vmatprep.subr.mxu0 0.0
    %1767 = vmatpush1.msra.mxu0 0.0
    %1768 = vmatprep.subr.mxu0 0.0
    %1769 = vmatpush1.msra.mxu0 0.0
    %1770 = vmatprep.subr.mxu0 0.0
    %1771 = vmatpush1.msra.mxu0 0.0
    %1772 = vmatprep.subr.mxu0 0.0
    %1773 = vmatpush1.msra.mxu0 0.0
    %1774 = vmatprep.subr.mxu0 0.0
    %1775 = vmatpush1.msra.mxu0 0.0
    %1776 = vmatprep.subr.mxu0 0.0
    %1777 = vmatpush1.msra.mxu0 0.0
    %1778 = vmatprep.subr.mxu0 0.0
    %1779 = vmatpush1.msra.mxu0 0.0
    %1780 = vmatprep.subr.mxu0 0.0
    %1781 = vmatpush1.msra.mxu0 0.0
    %1782 = vmatprep.subr.mxu0 0.0
    %1783 = vmatpush1.msra.mxu0 0.0
    %1784 = vmatprep.subr.mxu0 0.0
    %1785 = vmatpush1.msra.mxu0 0.0
    %1786 = vmatprep.subr.mxu0 0.0
    %1787 = vmatpush1.msra.mxu0 0.0
    %1788 = vmatprep.subr.mxu0 0.0
    %1789 = vmatpush1.msra.mxu0 0.0
    %1790 = vmatprep.subr.mxu0 0.0
    %1791 = vmatpush1.msra.mxu0 0.0
    %1792 = vmatprep.subr.mxu0 0.0
    %1793 = vmatpush1.msra.mxu0 0.0
    %1794 = vmatprep.subr.mxu0 0.0
    %1795 = vmatpush1.msra.mxu0 0.0
    %1796 = vmatprep.subr.mxu0 0.0
    %1797 = vmatpush1.msra.mxu0 0.0
    %1798 = vmatprep.subr.mxu0 0.0
    %1799 = vmatpush1.msra.mxu0 0.0
    %1800 = vmatprep.subr.mxu0 0.0
    %1801 = vmatpush1.msra.mxu0 0.0
    %1802 = vmatprep.mubr.f32.mxu0 0.0
    %1803 = vmatmul.mubr.f32.gmra.mrb[0].mxu0 %v1132
    %v1804 = vpop.f32.mrb[0].mxu0
    %v1805 = vadd.f32 0.0, %v1804
    %v1806 = vpop.f32.mrb[0].mxu0
    %1807 = vmatprep.mubr.f32.mxu0 0.0
    %1808 = vmatmul.mubr.f32.gmra.mrb[0].mxu0 %v1135
    %v1809 = vpop.f32.mrb[0].mxu0
    %v1810 = vadd.f32 0.0, %v1809
    %v1811 = vpop.f32.mrb[0].mxu0
    %1812 = vmatprep.mubr.f32.mxu0 0.0
    %1813 = vmatmul.mubr.f32.gmra.mrb[0].mxu0 %v1138
    %v1814 = vpop.f32.mrb[0].mxu0
    %v1815 = vadd.f32 0.0, %v1814
    %v1816 = vpop.f32.mrb[0].mxu0
    %1817 = vmatprep.mubr.f32.mxu0 0.0
    %1818 = vmatmul.mubr.f32.gmra.mrb[0].mxu0 %v1141
    %v1819 = vpop.f32.mrb[0].mxu0
    %v1820 = vadd.f32 0.0, %v1819
    %v1821 = vpop.f32.mrb[0].mxu0
    %1822 = vdwg.mxu0
    %v1824 = vsel %vm185, %v1210, 0
    %v1827 = vsel %vm185, %v1215, 0
    %v1830 = vsel %vm185, %v1220, 0
    %v1833 = vsel %vm185, %v1225, 0
    %1835 = vmatprep.subr.mxu0 0.0
    %1836 = vmatpush1.msra.mxu0 %v49
    %1837 = vmatprep.subr.mxu0 0.0
    %1838 = vmatpush1.msra.mxu0 0.0
    %1839 = vmatprep.subr.mxu0 0.0
    %1840 = vmatpush1.msra.mxu0 0.0
    %1841 = vmatprep.subr.mxu0 0.0
    %1842 = vmatpush1.msra.mxu0 0.0
    %1843 = vmatprep.subr.mxu0 0.0
    %1844 = vmatpush1.msra.mxu0 0.0
    %1845 = vmatprep.subr.mxu0 0.0
    %1846 = vmatpush1.msra.mxu0 0.0
    %1847 = vmatprep.subr.mxu0 0.0
    %1848 = vmatpush1.msra.mxu0 0.0
    %1849 = vmatprep.subr.mxu0 0.0
    %1850 = vmatpush1.msra.mxu0 0.0
    %1851 = vmatprep.subr.mxu0 0.0
    %1852 = vmatpush1.msra.mxu0 0.0
    %1853 = vmatprep.subr.mxu0 0.0
    %1854 = vmatpush1.msra.mxu0 0.0
    %1855 = vmatprep.subr.mxu0 0.0
    %1856 = vmatpush1.msra.mxu0 0.0
    %1857 = vmatprep.subr.mxu0 0.0
    %1858 = vmatpush1.msra.mxu0 0.0
    %1859 = vmatprep.subr.mxu0 0.0
    %1860 = vmatpush1.msra.mxu0 0.0
    %1861 = vmatprep.subr.mxu0 0.0
    %1862 = vmatpush1.msra.mxu0 0.0
    %1863 = vmatprep.subr.mxu0 0.0
    %1864 = vmatpush1.msra.mxu0 0.0
    %1865 = vmatprep.subr.mxu0 0.0
    %1866 = vmatpush1.msra.mxu0 0.0
    %1867 = vmatprep.subr.mxu0 0.0
    %1868 = vmatpush1.msra.mxu0 0.0
    %1869 = vmatprep.subr.mxu0 0.0
    %1870 = vmatpush1.msra.mxu0 0.0
    %1871 = vmatprep.subr.mxu0 0.0
    %1872 = vmatpush1.msra.mxu0 0.0
    %1873 = vmatprep.subr.mxu0 0.0
    %1874 = vmatpush1.msra.mxu0 0.0
    %1875 = vmatprep.subr.mxu0 0.0
    %1876 = vmatpush1.msra.mxu0 0.0
    %1877 = vmatprep.subr.mxu0 0.0
    %1878 = vmatpush1.msra.mxu0 0.0
    %1879 = vmatprep.subr.mxu0 0.0
    %1880 = vmatpush1.msra.mxu0 0.0
    %1881 = vmatprep.subr.mxu0 0.0
    %1882 = vmatpush1.msra.mxu0 0.0
    %1883 = vmatprep.subr.mxu0 0.0
    %1884 = vmatpush1.msra.mxu0 0.0
    %1885 = vmatprep.subr.mxu0 0.0
    %1886 = vmatpush1.msra.mxu0 0.0
    %1887 = vmatprep.subr.mxu0 0.0
    %1888 = vmatpush1.msra.mxu0 0.0
    %1889 = vmatprep.subr.mxu0 0.0
    %1890 = vmatpush1.msra.mxu0 0.0
    %1891 = vmatprep.subr.mxu0 0.0
    %1892 = vmatpush1.msra.mxu0 0.0
    %1893 = vmatprep.subr.mxu0 0.0
    %1894 = vmatpush1.msra.mxu0 0.0
    %1895 = vmatprep.subr.mxu0 0.0
    %1896 = vmatpush1.msra.mxu0 0.0
    %1897 = vmatprep.subr.mxu0 0.0
    %1898 = vmatpush1.msra.mxu0 0.0
    %1899 = vmatprep.mubr.f32.mxu0 0.0
    %1900 = vmatmul.mubr.f32.gmra.mrb[0].mxu0 %v1824
    %v1901 = vpop.f32.mrb[0].mxu0
    %v1902 = vadd.f32 0.0, %v1901
    %v1903 = vpop.f32.mrb[0].mxu0
    %1904 = vmatprep.mubr.f32.mxu0 0.0
    %1905 = vmatmul.mubr.f32.gmra.mrb[0].mxu0 %v1827
    %v1906 = vpop.f32.mrb[0].mxu0
    %v1907 = vadd.f32 0.0, %v1906
    %v1908 = vpop.f32.mrb[0].mxu0
    %1909 = vmatprep.mubr.f32.mxu0 0.0
    %1910 = vmatmul.mubr.f32.gmra.mrb[0].mxu0 %v1830
    %v1911 = vpop.f32.mrb[0].mxu0
    %v1912 = vadd.f32 0.0, %v1911
    %v1913 = vpop.f32.mrb[0].mxu0
    %1914 = vmatprep.mubr.f32.mxu0 0.0
    %1915 = vmatmul.mubr.f32.gmra.mrb[0].mxu0 %v1833
    %v1916 = vpop.f32.mrb[0].mxu0
    %v1917 = vadd.f32 0.0, %v1916
    %v1918 = vpop.f32.mrb[0].mxu0
    %1919 = vdwg.mxu0
    %v1921 = vsel %vm185, %v1295, 0
    %v1924 = vsel %vm185, %v1300, 0
    %v1927 = vsel %vm185, %v1305, 0
    %v1930 = vsel %vm185, %v1310, 0
    %1932 = vmatprep.subr.mxu0 0.0
    %1933 = vmatpush1.msra.mxu0 %v50
    %1934 = vmatprep.subr.mxu0 0.0
    %1935 = vmatpush1.msra.mxu0 0.0
    %1936 = vmatprep.subr.mxu0 0.0
    %1937 = vmatpush1.msra.mxu0 0.0
    %1938 = vmatprep.subr.mxu0 0.0
    %1939 = vmatpush1.msra.mxu0 0.0
    %1940 = vmatprep.subr.mxu0 0.0
    %1941 = vmatpush1.msra.mxu0 0.0
    %1942 = vmatprep.subr.mxu0 0.0
    %1943 = vmatpush1.msra.mxu0 0.0
    %1944 = vmatprep.subr.mxu0 0.0
    %1945 = vmatpush1.msra.mxu0 0.0
    %1946 = vmatprep.subr.mxu0 0.0
    %1947 = vmatpush1.msra.mxu0 0.0
    %1948 = vmatprep.subr.mxu0 0.0
    %1949 = vmatpush1.msra.mxu0 0.0
    %1950 = vmatprep.subr.mxu0 0.0
    %1951 = vmatpush1.msra.mxu0 0.0
    %1952 = vmatprep.subr.mxu0 0.0
    %1953 = vmatpush1.msra.mxu0 0.0
    %1954 = vmatprep.subr.mxu0 0.0
    %1955 = vmatpush1.msra.mxu0 0.0
    %1956 = vmatprep.subr.mxu0 0.0
    %1957 = vmatpush1.msra.mxu0 0.0
    %1958 = vmatprep.subr.mxu0 0.0
    %1959 = vmatpush1.msra.mxu0 0.0
    %1960 = vmatprep.subr.mxu0 0.0
    %1961 = vmatpush1.msra.mxu0 0.0
    %1962 = vmatprep.subr.mxu0 0.0
    %1963 = vmatpush1.msra.mxu0 0.0
    %1964 = vmatprep.subr.mxu0 0.0
    %1965 = vmatpush1.msra.mxu0 0.0
    %1966 = vmatprep.subr.mxu0 0.0
    %1967 = vmatpush1.msra.mxu0 0.0
    %1968 = vmatprep.subr.mxu0 0.0
    %1969 = vmatpush1.msra.mxu0 0.0
    %1970 = vmatprep.subr.mxu0 0.0
    %1971 = vmatpush1.msra.mxu0 0.0
    %1972 = vmatprep.subr.mxu0 0.0
    %1973 = vmatpush1.msra.mxu0 0.0
    %1974 = vmatprep.subr.mxu0 0.0
    %1975 = vmatpush1.msra.mxu0 0.0
    %1976 = vmatprep.subr.mxu0 0.0
    %1977 = vmatpush1.msra.mxu0 0.0
    %1978 = vmatprep.subr.mxu0 0.0
    %1979 = vmatpush1.msra.mxu0 0.0
    %1980 = vmatprep.subr.mxu0 0.0
    %1981 = vmatpush1.msra.mxu0 0.0
    %1982 = vmatprep.subr.mxu0 0.0
    %1983 = vmatpush1.msra.mxu0 0.0
    %1984 = vmatprep.subr.mxu0 0.0
    %1985 = vmatpush1.msra.mxu0 0.0
    %1986 = vmatprep.subr.mxu0 0.0
    %1987 = vmatpush1.msra.mxu0 0.0
    %1988 = vmatprep.subr.mxu0 0.0
    %1989 = vmatpush1.msra.mxu0 0.0
    %1990 = vmatprep.subr.mxu0 0.0
    %1991 = vmatpush1.msra.mxu0 0.0
    %1992 = vmatprep.subr.mxu0 0.0
    %1993 = vmatpush1.msra.mxu0 0.0
    %1994 = vmatprep.subr.mxu0 0.0
    %1995 = vmatpush1.msra.mxu0 0.0
    %1996 = vmatprep.mubr.f32.mxu0 0.0
    %1997 = vmatmul.mubr.f32.gmra.mrb[0].mxu0 %v1921
    %v1998 = vpop.f32.mrb[0].mxu0
    %v1999 = vadd.f32 0.0, %v1998
    %v2000 = vpop.f32.mrb[0].mxu0
    %2001 = vmatprep.mubr.f32.mxu0 0.0
    %2002 = vmatmul.mubr.f32.gmra.mrb[0].mxu0 %v1924
    %v2003 = vpop.f32.mrb[0].mxu0
    %v2004 = vadd.f32 0.0, %v2003
    %v2005 = vpop.f32.mrb[0].mxu0
    %2006 = vmatprep.mubr.f32.mxu0 0.0
    %2007 = vmatmul.mubr.f32.gmra.mrb[0].mxu0 %v1927
    %v2008 = vpop.f32.mrb[0].mxu0
    %v2009 = vadd.f32 0.0, %v2008
    %v2010 = vpop.f32.mrb[0].mxu0
    %2011 = vmatprep.mubr.f32.mxu0 0.0
    %2012 = vmatmul.mubr.f32.gmra.mrb[0].mxu0 %v1930
    %v2013 = vpop.f32.mrb[0].mxu0
    %v2014 = vadd.f32 0.0, %v2013
    %v2015 = vpop.f32.mrb[0].mxu0
    %2016 = vdwg.mxu0
    %v2018 = vsel %vm185, %v1380, 0
    %v2021 = vsel %vm185, %v1385, 0
    %v2024 = vsel %vm185, %v1390, 0
    %v2027 = vsel %vm185, %v1395, 0
    %2029 = vmatprep.subr.mxu0 0.0
    %2030 = vmatpush1.msra.mxu0 %v51
    %2031 = vmatprep.subr.mxu0 0.0
    %2032 = vmatpush1.msra.mxu0 0.0
    %2033 = vmatprep.subr.mxu0 0.0
    %2034 = vmatpush1.msra.mxu0 0.0
    %2035 = vmatprep.subr.mxu0 0.0
    %2036 = vmatpush1.msra.mxu0 0.0
    %2037 = vmatprep.subr.mxu0 0.0
    %2038 = vmatpush1.msra.mxu0 0.0
    %2039 = vmatprep.subr.mxu0 0.0
    %2040 = vmatpush1.msra.mxu0 0.0
    %2041 = vmatprep.subr.mxu0 0.0
    %2042 = vmatpush1.msra.mxu0 0.0
    %2043 = vmatprep.subr.mxu0 0.0
    %2044 = vmatpush1.msra.mxu0 0.0
    %2045 = vmatprep.subr.mxu0 0.0
    %2046 = vmatpush1.msra.mxu0 0.0
    %2047 = vmatprep.subr.mxu0 0.0
    %2048 = vmatpush1.msra.mxu0 0.0
    %2049 = vmatprep.subr.mxu0 0.0
    %2050 = vmatpush1.msra.mxu0 0.0
    %2051 = vmatprep.subr.mxu0 0.0
    %2052 = vmatpush1.msra.mxu0 0.0
    %2053 = vmatprep.subr.mxu0 0.0
    %2054 = vmatpush1.msra.mxu0 0.0
    %2055 = vmatprep.subr.mxu0 0.0
    %2056 = vmatpush1.msra.mxu0 0.0
    %2057 = vmatprep.subr.mxu0 0.0
    %2058 = vmatpush1.msra.mxu0 0.0
    %2059 = vmatprep.subr.mxu0 0.0
    %2060 = vmatpush1.msra.mxu0 0.0
    %2061 = vmatprep.subr.mxu0 0.0
    %2062 = vmatpush1.msra.mxu0 0.0
    %2063 = vmatprep.subr.mxu0 0.0
    %2064 = vmatpush1.msra.mxu0 0.0
    %2065 = vmatprep.subr.mxu0 0.0
    %2066 = vmatpush1.msra.mxu0 0.0
    %2067 = vmatprep.subr.mxu0 0.0
    %2068 = vmatpush1.msra.mxu0 0.0
    %2069 = vmatprep.subr.mxu0 0.0
    %2070 = vmatpush1.msra.mxu0 0.0
    %2071 = vmatprep.subr.mxu0 0.0
    %2072 = vmatpush1.msra.mxu0 0.0
    %2073 = vmatprep.subr.mxu0 0.0
    %2074 = vmatpush1.msra.mxu0 0.0
    %2075 = vmatprep.subr.mxu0 0.0
    %2076 = vmatpush1.msra.mxu0 0.0
    %2077 = vmatprep.subr.mxu0 0.0
    %2078 = vmatpush1.msra.mxu0 0.0
    %2079 = vmatprep.subr.mxu0 0.0
    %2080 = vmatpush1.msra.mxu0 0.0
    %2081 = vmatprep.subr.mxu0 0.0
    %2082 = vmatpush1.msra.mxu0 0.0
    %2083 = vmatprep.subr.mxu0 0.0
    %2084 = vmatpush1.msra.mxu0 0.0
    %2085 = vmatprep.subr.mxu0 0.0
    %2086 = vmatpush1.msra.mxu0 0.0
    %2087 = vmatprep.subr.mxu0 0.0
    %2088 = vmatpush1.msra.mxu0 0.0
    %2089 = vmatprep.subr.mxu0 0.0
    %2090 = vmatpush1.msra.mxu0 0.0
    %2091 = vmatprep.subr.mxu0 0.0
    %2092 = vmatpush1.msra.mxu0 0.0
    %2093 = vmatprep.mubr.f32.mxu0 0.0
    %2094 = vmatmul.mubr.f32.gmra.mrb[0].mxu0 %v2018
    %v2095 = vpop.f32.mrb[0].mxu0
    %v2096 = vadd.f32 0.0, %v2095
    %v2097 = vpop.f32.mrb[0].mxu0
    %2098 = vmatprep.mubr.f32.mxu0 0.0
    %2099 = vmatmul.mubr.f32.gmra.mrb[0].mxu0 %v2021
    %v2100 = vpop.f32.mrb[0].mxu0
    %v2101 = vadd.f32 0.0, %v2100
    %v2102 = vpop.f32.mrb[0].mxu0
    %2103 = vmatprep.mubr.f32.mxu0 0.0
    %2104 = vmatmul.mubr.f32.gmra.mrb[0].mxu0 %v2024
    %v2105 = vpop.f32.mrb[0].mxu0
    %v2106 = vadd.f32 0.0, %v2105
    %v2107 = vpop.f32.mrb[0].mxu0
    %2108 = vmatprep.mubr.f32.mxu0 0.0
    %2109 = vmatmul.mubr.f32.gmra.mrb[0].mxu0 %v2027
    %v2110 = vpop.f32.mrb[0].mxu0
    %v2111 = vadd.f32 0.0, %v2110
    %v2112 = vpop.f32.mrb[0].mxu0
    %2113 = vdwg.mxu0
    %v2115 = vsel %vm185, %v1465, 0
    %v2118 = vsel %vm185, %v1470, 0
    %v2121 = vsel %vm185, %v1475, 0
    %v2124 = vsel %vm185, %v1480, 0
    %2126 = vmatprep.subr.mxu0 0.0
    %2127 = vmatpush1.msra.mxu0 %v52
    %2128 = vmatprep.subr.mxu0 0.0
    %2129 = vmatpush1.msra.mxu0 0.0
    %2130 = vmatprep.subr.mxu0 0.0
    %2131 = vmatpush1.msra.mxu0 0.0
    %2132 = vmatprep.subr.mxu0 0.0
    %2133 = vmatpush1.msra.mxu0 0.0
    %2134 = vmatprep.subr.mxu0 0.0
    %2135 = vmatpush1.msra.mxu0 0.0
    %2136 = vmatprep.subr.mxu0 0.0
    %2137 = vmatpush1.msra.mxu0 0.0
    %2138 = vmatprep.subr.mxu0 0.0
    %2139 = vmatpush1.msra.mxu0 0.0
    %2140 = vmatprep.subr.mxu0 0.0
    %2141 = vmatpush1.msra.mxu0 0.0
    %2142 = vmatprep.subr.mxu0 0.0
    %2143 = vmatpush1.msra.mxu0 0.0
    %2144 = vmatprep.subr.mxu0 0.0
    %2145 = vmatpush1.msra.mxu0 0.0
    %2146 = vmatprep.subr.mxu0 0.0
    %2147 = vmatpush1.msra.mxu0 0.0
    %2148 = vmatprep.subr.mxu0 0.0
    %2149 = vmatpush1.msra.mxu0 0.0
    %2150 = vmatprep.subr.mxu0 0.0
    %2151 = vmatpush1.msra.mxu0 0.0
    %2152 = vmatprep.subr.mxu0 0.0
    %2153 = vmatpush1.msra.mxu0 0.0
    %2154 = vmatprep.subr.mxu0 0.0
    %2155 = vmatpush1.msra.mxu0 0.0
    %2156 = vmatprep.subr.mxu0 0.0
    %2157 = vmatpush1.msra.mxu0 0.0
    %2158 = vmatprep.subr.mxu0 0.0
    %2159 = vmatpush1.msra.mxu0 0.0
    %2160 = vmatprep.subr.mxu0 0.0
    %2161 = vmatpush1.msra.mxu0 0.0
    %2162 = vmatprep.subr.mxu0 0.0
    %2163 = vmatpush1.msra.mxu0 0.0
    %2164 = vmatprep.subr.mxu0 0.0
    %2165 = vmatpush1.msra.mxu0 0.0
    %2166 = vmatprep.subr.mxu0 0.0
    %2167 = vmatpush1.msra.mxu0 0.0
    %2168 = vmatprep.subr.mxu0 0.0
    %2169 = vmatpush1.msra.mxu0 0.0
    %2170 = vmatprep.subr.mxu0 0.0
    %2171 = vmatpush1.msra.mxu0 0.0
    %2172 = vmatprep.subr.mxu0 0.0
    %2173 = vmatpush1.msra.mxu0 0.0
    %2174 = vmatprep.subr.mxu0 0.0
    %2175 = vmatpush1.msra.mxu0 0.0
    %2176 = vmatprep.subr.mxu0 0.0
    %2177 = vmatpush1.msra.mxu0 0.0
    %2178 = vmatprep.subr.mxu0 0.0
    %2179 = vmatpush1.msra.mxu0 0.0
    %2180 = vmatprep.subr.mxu0 0.0
    %2181 = vmatpush1.msra.mxu0 0.0
    %2182 = vmatprep.subr.mxu0 0.0
    %2183 = vmatpush1.msra.mxu0 0.0
    %2184 = vmatprep.subr.mxu0 0.0
    %2185 = vmatpush1.msra.mxu0 0.0
    %2186 = vmatprep.subr.mxu0 0.0
    %2187 = vmatpush1.msra.mxu0 0.0
    %2188 = vmatprep.subr.mxu0 0.0
    %2189 = vmatpush1.msra.mxu0 0.0
    %2190 = vmatprep.mubr.f32.mxu0 0.0
    %2191 = vmatmul.mubr.f32.gmra.mrb[0].mxu0 %v2115
    %v2192 = vpop.f32.mrb[0].mxu0
    %v2193 = vadd.f32 0.0, %v2192
    %v2194 = vpop.f32.mrb[0].mxu0
    %2195 = vmatprep.mubr.f32.mxu0 0.0
    %2196 = vmatmul.mubr.f32.gmra.mrb[0].mxu0 %v2118
    %v2197 = vpop.f32.mrb[0].mxu0
    %v2198 = vadd.f32 0.0, %v2197
    %v2199 = vpop.f32.mrb[0].mxu0
    %2200 = vmatprep.mubr.f32.mxu0 0.0
    %2201 = vmatmul.mubr.f32.gmra.mrb[0].mxu0 %v2121
    %v2202 = vpop.f32.mrb[0].mxu0
    %v2203 = vadd.f32 0.0, %v2202
    %v2204 = vpop.f32.mrb[0].mxu0
    %2205 = vmatprep.mubr.f32.mxu0 0.0
    %2206 = vmatmul.mubr.f32.gmra.mrb[0].mxu0 %v2124
    %v2207 = vpop.f32.mrb[0].mxu0
    %v2208 = vadd.f32 0.0, %v2207
    %v2209 = vpop.f32.mrb[0].mxu0
    %2210 = vdwg.mxu0
    %v2212 = vsel %vm185, %v1550, 0
    %v2215 = vsel %vm185, %v1555, 0
    %v2218 = vsel %vm185, %v1560, 0
    %v2221 = vsel %vm185, %v1565, 0
    %2223 = vmatprep.subr.mxu0 0.0
    %2224 = vmatpush1.msra.mxu0 %v53
    %2225 = vmatprep.subr.mxu0 0.0
    %2226 = vmatpush1.msra.mxu0 0.0
    %2227 = vmatprep.subr.mxu0 0.0
    %2228 = vmatpush1.msra.mxu0 0.0
    %2229 = vmatprep.subr.mxu0 0.0
    %2230 = vmatpush1.msra.mxu0 0.0
    %2231 = vmatprep.subr.mxu0 0.0
    %2232 = vmatpush1.msra.mxu0 0.0
    %2233 = vmatprep.subr.mxu0 0.0
    %2234 = vmatpush1.msra.mxu0 0.0
    %2235 = vmatprep.subr.mxu0 0.0
    %2236 = vmatpush1.msra.mxu0 0.0
    %2237 = vmatprep.subr.mxu0 0.0
    %2238 = vmatpush1.msra.mxu0 0.0
    %2239 = vmatprep.subr.mxu0 0.0
    %2240 = vmatpush1.msra.mxu0 0.0
    %2241 = vmatprep.subr.mxu0 0.0
    %2242 = vmatpush1.msra.mxu0 0.0
    %2243 = vmatprep.subr.mxu0 0.0
    %2244 = vmatpush1.msra.mxu0 0.0
    %2245 = vmatprep.subr.mxu0 0.0
    %2246 = vmatpush1.msra.mxu0 0.0
    %2247 = vmatprep.subr.mxu0 0.0
    %2248 = vmatpush1.msra.mxu0 0.0
    %2249 = vmatprep.subr.mxu0 0.0
    %2250 = vmatpush1.msra.mxu0 0.0
    %2251 = vmatprep.subr.mxu0 0.0
    %2252 = vmatpush1.msra.mxu0 0.0
    %2253 = vmatprep.subr.mxu0 0.0
    %2254 = vmatpush1.msra.mxu0 0.0
    %2255 = vmatprep.subr.mxu0 0.0
    %2256 = vmatpush1.msra.mxu0 0.0
    %2257 = vmatprep.subr.mxu0 0.0
    %2258 = vmatpush1.msra.mxu0 0.0
    %2259 = vmatprep.subr.mxu0 0.0
    %2260 = vmatpush1.msra.mxu0 0.0
    %2261 = vmatprep.subr.mxu0 0.0
    %2262 = vmatpush1.msra.mxu0 0.0
    %2263 = vmatprep.subr.mxu0 0.0
    %2264 = vmatpush1.msra.mxu0 0.0
    %2265 = vmatprep.subr.mxu0 0.0
    %2266 = vmatpush1.msra.mxu0 0.0
    %2267 = vmatprep.subr.mxu0 0.0
    %2268 = vmatpush1.msra.mxu0 0.0
    %2269 = vmatprep.subr.mxu0 0.0
    %2270 = vmatpush1.msra.mxu0 0.0
    %2271 = vmatprep.subr.mxu0 0.0
    %2272 = vmatpush1.msra.mxu0 0.0
    %2273 = vmatprep.subr.mxu0 0.0
    %2274 = vmatpush1.msra.mxu0 0.0
    %2275 = vmatprep.subr.mxu0 0.0
    %2276 = vmatpush1.msra.mxu0 0.0
    %2277 = vmatprep.subr.mxu0 0.0
    %2278 = vmatpush1.msra.mxu0 0.0
    %2279 = vmatprep.subr.mxu0 0.0
    %2280 = vmatpush1.msra.mxu0 0.0
    %2281 = vmatprep.subr.mxu0 0.0
    %2282 = vmatpush1.msra.mxu0 0.0
    %2283 = vmatprep.subr.mxu0 0.0
    %2284 = vmatpush1.msra.mxu0 0.0
    %2285 = vmatprep.subr.mxu0 0.0
    %2286 = vmatpush1.msra.mxu0 0.0
    %2287 = vmatprep.mubr.f32.mxu0 0.0
    %2288 = vmatmul.mubr.f32.gmra.mrb[0].mxu0 %v2212
    %v2289 = vpop.f32.mrb[0].mxu0
    %v2290 = vadd.f32 0.0, %v2289
    %v2291 = vpop.f32.mrb[0].mxu0
    %2292 = vmatprep.mubr.f32.mxu0 0.0
    %2293 = vmatmul.mubr.f32.gmra.mrb[0].mxu0 %v2215
    %v2294 = vpop.f32.mrb[0].mxu0
    %v2295 = vadd.f32 0.0, %v2294
    %v2296 = vpop.f32.mrb[0].mxu0
    %2297 = vmatprep.mubr.f32.mxu0 0.0
    %2298 = vmatmul.mubr.f32.gmra.mrb[0].mxu0 %v2218
    %v2299 = vpop.f32.mrb[0].mxu0
    %v2300 = vadd.f32 0.0, %v2299
    %v2301 = vpop.f32.mrb[0].mxu0
    %2302 = vmatprep.mubr.f32.mxu0 0.0
    %2303 = vmatmul.mubr.f32.gmra.mrb[0].mxu0 %v2221
    %v2304 = vpop.f32.mrb[0].mxu0
    %v2305 = vadd.f32 0.0, %v2304
    %v2306 = vpop.f32.mrb[0].mxu0
    %2307 = vdwg.mxu0
    %v2309 = vsel %vm185, %v1635, 0
    %v2312 = vsel %vm185, %v1640, 0
    %v2315 = vsel %vm185, %v1645, 0
    %v2318 = vsel %vm185, %v1650, 0
    %2320 = vmatprep.subr.mxu0 0.0
    %2321 = vmatpush1.msra.mxu0 %v54
    %2322 = vmatprep.subr.mxu0 0.0
    %2323 = vmatpush1.msra.mxu0 0.0
    %2324 = vmatprep.subr.mxu0 0.0
    %2325 = vmatpush1.msra.mxu0 0.0
    %2326 = vmatprep.subr.mxu0 0.0
    %2327 = vmatpush1.msra.mxu0 0.0
    %2328 = vmatprep.subr.mxu0 0.0
    %2329 = vmatpush1.msra.mxu0 0.0
    %2330 = vmatprep.subr.mxu0 0.0
    %2331 = vmatpush1.msra.mxu0 0.0
    %2332 = vmatprep.subr.mxu0 0.0
    %2333 = vmatpush1.msra.mxu0 0.0
    %2334 = vmatprep.subr.mxu0 0.0
    %2335 = vmatpush1.msra.mxu0 0.0
    %2336 = vmatprep.subr.mxu0 0.0
    %2337 = vmatpush1.msra.mxu0 0.0
    %2338 = vmatprep.subr.mxu0 0.0
    %2339 = vmatpush1.msra.mxu0 0.0
    %2340 = vmatprep.subr.mxu0 0.0
    %2341 = vmatpush1.msra.mxu0 0.0
    %2342 = vmatprep.subr.mxu0 0.0
    %2343 = vmatpush1.msra.mxu0 0.0
    %2344 = vmatprep.subr.mxu0 0.0
    %2345 = vmatpush1.msra.mxu0 0.0
    %2346 = vmatprep.subr.mxu0 0.0
    %2347 = vmatpush1.msra.mxu0 0.0
    %2348 = vmatprep.subr.mxu0 0.0
    %2349 = vmatpush1.msra.mxu0 0.0
    %2350 = vmatprep.subr.mxu0 0.0
    %2351 = vmatpush1.msra.mxu0 0.0
    %2352 = vmatprep.subr.mxu0 0.0
    %2353 = vmatpush1.msra.mxu0 0.0
    %2354 = vmatprep.subr.mxu0 0.0
    %2355 = vmatpush1.msra.mxu0 0.0
    %2356 = vmatprep.subr.mxu0 0.0
    %2357 = vmatpush1.msra.mxu0 0.0
    %2358 = vmatprep.subr.mxu0 0.0
    %2359 = vmatpush1.msra.mxu0 0.0
    %2360 = vmatprep.subr.mxu0 0.0
    %2361 = vmatpush1.msra.mxu0 0.0
    %2362 = vmatprep.subr.mxu0 0.0
    %2363 = vmatpush1.msra.mxu0 0.0
    %2364 = vmatprep.subr.mxu0 0.0
    %2365 = vmatpush1.msra.mxu0 0.0
    %2366 = vmatprep.subr.mxu0 0.0
    %2367 = vmatpush1.msra.mxu0 0.0
    %2368 = vmatprep.subr.mxu0 0.0
    %2369 = vmatpush1.msra.mxu0 0.0
    %2370 = vmatprep.subr.mxu0 0.0
    %2371 = vmatpush1.msra.mxu0 0.0
    %2372 = vmatprep.subr.mxu0 0.0
    %2373 = vmatpush1.msra.mxu0 0.0
    %2374 = vmatprep.subr.mxu0 0.0
    %2375 = vmatpush1.msra.mxu0 0.0
    %2376 = vmatprep.subr.mxu0 0.0
    %2377 = vmatpush1.msra.mxu0 0.0
    %2378 = vmatprep.subr.mxu0 0.0
    %2379 = vmatpush1.msra.mxu0 0.0
    %2380 = vmatprep.subr.mxu0 0.0
    %2381 = vmatpush1.msra.mxu0 0.0
    %2382 = vmatprep.subr.mxu0 0.0
    %2383 = vmatpush1.msra.mxu0 0.0
    %2384 = vmatprep.mubr.f32.mxu0 0.0
    %2385 = vmatmul.mubr.f32.gmra.mrb[0].mxu0 %v2309
    %v2386 = vpop.f32.mrb[0].mxu0
    %v2387 = vadd.f32 0.0, %v2386
    %v2388 = vpop.f32.mrb[0].mxu0
    %2389 = vmatprep.mubr.f32.mxu0 0.0
    %2390 = vmatmul.mubr.f32.gmra.mrb[0].mxu0 %v2312
    %v2391 = vpop.f32.mrb[0].mxu0
    %v2392 = vadd.f32 0.0, %v2391
    %v2393 = vpop.f32.mrb[0].mxu0
    %2394 = vmatprep.mubr.f32.mxu0 0.0
    %2395 = vmatmul.mubr.f32.gmra.mrb[0].mxu0 %v2315
    %v2396 = vpop.f32.mrb[0].mxu0
    %v2397 = vadd.f32 0.0, %v2396
    %v2398 = vpop.f32.mrb[0].mxu0
    %2399 = vmatprep.mubr.f32.mxu0 0.0
    %2400 = vmatmul.mubr.f32.gmra.mrb[0].mxu0 %v2318
    %v2401 = vpop.f32.mrb[0].mxu0
    %v2402 = vadd.f32 0.0, %v2401
    %v2403 = vpop.f32.mrb[0].mxu0
    %2404 = vdwg.mxu0
    %v2406 = vsel %vm185, %v1720, 0
    %v2409 = vsel %vm185, %v1725, 0
    %v2412 = vsel %vm185, %v1730, 0
    %v2415 = vsel %vm185, %v1735, 0
    %2417 = vmatprep.subr.mxu0 0.0
    %2418 = vmatpush1.msra.mxu0 %v55
    %2419 = vmatprep.subr.mxu0 0.0
    %2420 = vmatpush1.msra.mxu0 0.0
    %2421 = vmatprep.subr.mxu0 0.0
    %2422 = vmatpush1.msra.mxu0 0.0
    %2423 = vmatprep.subr.mxu0 0.0
    %2424 = vmatpush1.msra.mxu0 0.0
    %2425 = vmatprep.subr.mxu0 0.0
    %2426 = vmatpush1.msra.mxu0 0.0
    %2427 = vmatprep.subr.mxu0 0.0
    %2428 = vmatpush1.msra.mxu0 0.0
    %2429 = vmatprep.subr.mxu0 0.0
    %2430 = vmatpush1.msra.mxu0 0.0
    %2431 = vmatprep.subr.mxu0 0.0
    %2432 = vmatpush1.msra.mxu0 0.0
    %2433 = vmatprep.subr.mxu0 0.0
    %2434 = vmatpush1.msra.mxu0 0.0
    %2435 = vmatprep.subr.mxu0 0.0
    %2436 = vmatpush1.msra.mxu0 0.0
    %2437 = vmatprep.subr.mxu0 0.0
    %2438 = vmatpush1.msra.mxu0 0.0
    %2439 = vmatprep.subr.mxu0 0.0
    %2440 = vmatpush1.msra.mxu0 0.0
    %2441 = vmatprep.subr.mxu0 0.0
    %2442 = vmatpush1.msra.mxu0 0.0
    %2443 = vmatprep.subr.mxu0 0.0
    %2444 = vmatpush1.msra.mxu0 0.0
    %2445 = vmatprep.subr.mxu0 0.0
    %2446 = vmatpush1.msra.mxu0 0.0
    %2447 = vmatprep.subr.mxu0 0.0
    %2448 = vmatpush1.msra.mxu0 0.0
    %2449 = vmatprep.subr.mxu0 0.0
    %2450 = vmatpush1.msra.mxu0 0.0
    %2451 = vmatprep.subr.mxu0 0.0
    %2452 = vmatpush1.msra.mxu0 0.0
    %2453 = vmatprep.subr.mxu0 0.0
    %2454 = vmatpush1.msra.mxu0 0.0
    %2455 = vmatprep.subr.mxu0 0.0
    %2456 = vmatpush1.msra.mxu0 0.0
    %2457 = vmatprep.subr.mxu0 0.0
    %2458 = vmatpush1.msra.mxu0 0.0
    %2459 = vmatprep.subr.mxu0 0.0
    %2460 = vmatpush1.msra.mxu0 0.0
    %2461 = vmatprep.subr.mxu0 0.0
    %2462 = vmatpush1.msra.mxu0 0.0
    %2463 = vmatprep.subr.mxu0 0.0
    %2464 = vmatpush1.msra.mxu0 0.0
    %2465 = vmatprep.subr.mxu0 0.0
    %2466 = vmatpush1.msra.mxu0 0.0
    %2467 = vmatprep.subr.mxu0 0.0
    %2468 = vmatpush1.msra.mxu0 0.0
    %2469 = vmatprep.subr.mxu0 0.0
    %2470 = vmatpush1.msra.mxu0 0.0
    %2471 = vmatprep.subr.mxu0 0.0
    %2472 = vmatpush1.msra.mxu0 0.0
    %2473 = vmatprep.subr.mxu0 0.0
    %2474 = vmatpush1.msra.mxu0 0.0
    %2475 = vmatprep.subr.mxu0 0.0
    %2476 = vmatpush1.msra.mxu0 0.0
    %2477 = vmatprep.subr.mxu0 0.0
    %2478 = vmatpush1.msra.mxu0 0.0
    %2479 = vmatprep.subr.mxu0 0.0
    %2480 = vmatpush1.msra.mxu0 0.0
    %2481 = vmatprep.mubr.f32.mxu0 0.0
    %2482 = vmatmul.mubr.f32.gmra.mrb[0].mxu0 %v2406
    %v2483 = vpop.f32.mrb[0].mxu0
    %v2484 = vadd.f32 0.0, %v2483
    %v2485 = vpop.f32.mrb[0].mxu0
    %2486 = vmatprep.mubr.f32.mxu0 0.0
    %2487 = vmatmul.mubr.f32.gmra.mrb[0].mxu0 %v2409
    %v2488 = vpop.f32.mrb[0].mxu0
    %v2489 = vadd.f32 0.0, %v2488
    %v2490 = vpop.f32.mrb[0].mxu0
    %2491 = vmatprep.mubr.f32.mxu0 0.0
    %2492 = vmatmul.mubr.f32.gmra.mrb[0].mxu0 %v2412
    %v2493 = vpop.f32.mrb[0].mxu0
    %v2494 = vadd.f32 0.0, %v2493
    %v2495 = vpop.f32.mrb[0].mxu0
    %2496 = vmatprep.mubr.f32.mxu0 0.0
    %2497 = vmatmul.mubr.f32.gmra.mrb[0].mxu0 %v2415
    %v2498 = vpop.f32.mrb[0].mxu0
    %v2499 = vadd.f32 0.0, %v2498
    %v2500 = vpop.f32.mrb[0].mxu0
    %2501 = vdwg.mxu0
    %v2503 = vsel %vm185, %v1805, 0
    %v2506 = vsel %vm185, %v1810, 0
    %v2509 = vsel %vm185, %v1815, 0
    %v2512 = vsel %vm185, %v1820, 0
    %2514 = vmatprep.subr.mxu0 0.0
    %2515 = vmatpush1.msra.mxu0 %v56
    %2516 = vmatprep.subr.mxu0 0.0
    %2517 = vmatpush1.msra.mxu0 0.0
    %2518 = vmatprep.subr.mxu0 0.0
    %2519 = vmatpush1.msra.mxu0 0.0
    %2520 = vmatprep.subr.mxu0 0.0
    %2521 = vmatpush1.msra.mxu0 0.0
    %2522 = vmatprep.subr.mxu0 0.0
    %2523 = vmatpush1.msra.mxu0 0.0
    %2524 = vmatprep.subr.mxu0 0.0
    %2525 = vmatpush1.msra.mxu0 0.0
    %2526 = vmatprep.subr.mxu0 0.0
    %2527 = vmatpush1.msra.mxu0 0.0
    %2528 = vmatprep.subr.mxu0 0.0
    %2529 = vmatpush1.msra.mxu0 0.0
    %2530 = vmatprep.subr.mxu0 0.0
    %2531 = vmatpush1.msra.mxu0 0.0
    %2532 = vmatprep.subr.mxu0 0.0
    %2533 = vmatpush1.msra.mxu0 0.0
    %2534 = vmatprep.subr.mxu0 0.0
    %2535 = vmatpush1.msra.mxu0 0.0
    %2536 = vmatprep.subr.mxu0 0.0
    %2537 = vmatpush1.msra.mxu0 0.0
    %2538 = vmatprep.subr.mxu0 0.0
    %2539 = vmatpush1.msra.mxu0 0.0
    %2540 = vmatprep.subr.mxu0 0.0
    %2541 = vmatpush1.msra.mxu0 0.0
    %2542 = vmatprep.subr.mxu0 0.0
    %2543 = vmatpush1.msra.mxu0 0.0
    %2544 = vmatprep.subr.mxu0 0.0
    %2545 = vmatpush1.msra.mxu0 0.0
    %2546 = vmatprep.subr.mxu0 0.0
    %2547 = vmatpush1.msra.mxu0 0.0
    %2548 = vmatprep.subr.mxu0 0.0
    %2549 = vmatpush1.msra.mxu0 0.0
    %2550 = vmatprep.subr.mxu0 0.0
    %2551 = vmatpush1.msra.mxu0 0.0
    %2552 = vmatprep.subr.mxu0 0.0
    %2553 = vmatpush1.msra.mxu0 0.0
    %2554 = vmatprep.subr.mxu0 0.0
    %2555 = vmatpush1.msra.mxu0 0.0
    %2556 = vmatprep.subr.mxu0 0.0
    %2557 = vmatpush1.msra.mxu0 0.0
    %2558 = vmatprep.subr.mxu0 0.0
    %2559 = vmatpush1.msra.mxu0 0.0
    %2560 = vmatprep.subr.mxu0 0.0
    %2561 = vmatpush1.msra.mxu0 0.0
    %2562 = vmatprep.subr.mxu0 0.0
    %2563 = vmatpush1.msra.mxu0 0.0
    %2564 = vmatprep.subr.mxu0 0.0
    %2565 = vmatpush1.msra.mxu0 0.0
    %2566 = vmatprep.subr.mxu0 0.0
    %2567 = vmatpush1.msra.mxu0 0.0
    %2568 = vmatprep.subr.mxu0 0.0
    %2569 = vmatpush1.msra.mxu0 0.0
    %2570 = vmatprep.subr.mxu0 0.0
    %2571 = vmatpush1.msra.mxu0 0.0
    %2572 = vmatprep.subr.mxu0 0.0
    %2573 = vmatpush1.msra.mxu0 0.0
    %2574 = vmatprep.subr.mxu0 0.0
    %2575 = vmatpush1.msra.mxu0 0.0
    %2576 = vmatprep.subr.mxu0 0.0
    %2577 = vmatpush1.msra.mxu0 0.0
    %2578 = vmatprep.mubr.f32.mxu0 0.0
    %2579 = vmatmul.mubr.f32.gmra.mrb[0].mxu0 %v2503
    %v2580 = vpop.f32.mrb[0].mxu0
    %v2581 = vadd.f32 0.0, %v2580
    %v2582 = vpop.f32.mrb[0].mxu0
    %2583 = vmatprep.mubr.f32.mxu0 0.0
    %2584 = vmatmul.mubr.f32.gmra.mrb[0].mxu0 %v2506
    %v2585 = vpop.f32.mrb[0].mxu0
    %v2586 = vadd.f32 0.0, %v2585
    %v2587 = vpop.f32.mrb[0].mxu0
    %2588 = vmatprep.mubr.f32.mxu0 0.0
    %2589 = vmatmul.mubr.f32.gmra.mrb[0].mxu0 %v2509
    %v2590 = vpop.f32.mrb[0].mxu0
    %v2591 = vadd.f32 0.0, %v2590
    %v2592 = vpop.f32.mrb[0].mxu0
    %2593 = vmatprep.mubr.f32.mxu0 0.0
    %2594 = vmatmul.mubr.f32.gmra.mrb[0].mxu0 %v2512
    %v2595 = vpop.f32.mrb[0].mxu0
    %v2596 = vadd.f32 0.0, %v2595
    %v2597 = vpop.f32.mrb[0].mxu0
    %2598 = vdwg.mxu0
    %v2599 = vmul.f32 %v1902, %v973
    %v2600 = vmul.f32 %v1907, %v973
    %v2601 = vmul.f32 %v1912, %v973
    %v2602 = vmul.f32 %v1917, %v973
    %v2603 = vmul.f32 %v1999, %v977
    %v2604 = vmul.f32 %v2004, %v977
    %v2605 = vmul.f32 %v2009, %v977
    %v2606 = vmul.f32 %v2014, %v977
    %v2607 = vmul.f32 %v2096, %v981
    %v2608 = vmul.f32 %v2101, %v981
    %v2609 = vmul.f32 %v2106, %v981
    %v2610 = vmul.f32 %v2111, %v981
    %v2611 = vmul.f32 %v2193, %v985
    %v2612 = vmul.f32 %v2198, %v985
    %v2613 = vmul.f32 %v2203, %v985
    %v2614 = vmul.f32 %v2208, %v985
    %v2615 = vmul.f32 %v2290, %v989
    %v2616 = vmul.f32 %v2295, %v989
    %v2617 = vmul.f32 %v2300, %v989
    %v2618 = vmul.f32 %v2305, %v989
    %v2619 = vmul.f32 %v2387, %v993
    %v2620 = vmul.f32 %v2392, %v993
    %v2621 = vmul.f32 %v2397, %v993
    %v2622 = vmul.f32 %v2402, %v993
    %v2623 = vmul.f32 %v2484, %v997
    %v2624 = vmul.f32 %v2489, %v997
    %v2625 = vmul.f32 %v2494, %v997
    %v2626 = vmul.f32 %v2499, %v997
    %v2627 = vmul.f32 %v2581, %v1001
    %v2628 = vmul.f32 %v2586, %v1001
    %v2629 = vmul.f32 %v2591, %v1001
    %v2630 = vmul.f32 %v2596, %v1001
    %2632 = vset.pattern.permute.xlu0 0
    %2633 = vperm.xlu0 %2632, %v81
    %v2634 = vpop.permute.xlu0 %2633
    %2637 = vset.pattern.permute.xlu0 0
    %2638 = vperm.xlu0 %2637, %v82
    %v2639 = vpop.permute.xlu0 %2638
    %2642 = vset.pattern.permute.xlu0 0
    %2643 = vperm.xlu0 %2642, %v83
    %v2644 = vpop.permute.xlu0 %2643
    %2647 = vset.pattern.permute.xlu0 0
    %2648 = vperm.xlu0 %2647, %v84
    %v2649 = vpop.permute.xlu0 %2648
    %v2651 = vadd.f32 %v2599, %v2634
    %v2652 = vadd.f32 %v2600, %v2639
    %v2653 = vadd.f32 %v2601, %v2644
    %v2654 = vadd.f32 %v2602, %v2649
    %v2655 = vadd.f32 %v2603, %v2634
    %v2656 = vadd.f32 %v2604, %v2639
    %v2657 = vadd.f32 %v2605, %v2644
    %v2658 = vadd.f32 %v2606, %v2649
    %v2659 = vadd.f32 %v2607, %v2634
    %v2660 = vadd.f32 %v2608, %v2639
    %v2661 = vadd.f32 %v2609, %v2644
    %v2662 = vadd.f32 %v2610, %v2649
    %v2663 = vadd.f32 %v2611, %v2634
    %v2664 = vadd.f32 %v2612, %v2639
    %v2665 = vadd.f32 %v2613, %v2644
    %v2666 = vadd.f32 %v2614, %v2649
    %v2667 = vadd.f32 %v2615, %v2634
    %v2668 = vadd.f32 %v2616, %v2639
    %v2669 = vadd.f32 %v2617, %v2644
    %v2670 = vadd.f32 %v2618, %v2649
    %v2671 = vadd.f32 %v2619, %v2634
    %v2672 = vadd.f32 %v2620, %v2639
    %v2673 = vadd.f32 %v2621, %v2644
    %v2674 = vadd.f32 %v2622, %v2649
    %v2675 = vadd.f32 %v2623, %v2634
    %v2676 = vadd.f32 %v2624, %v2639
    %v2677 = vadd.f32 %v2625, %v2644
    %v2678 = vadd.f32 %v2626, %v2649
    %v2679 = vadd.f32 %v2627, %v2634
    %v2680 = vadd.f32 %v2628, %v2639
    %v2681 = vadd.f32 %v2629, %v2644
    %v2682 = vadd.f32 %v2630, %v2649
    %v2683 = vmax.f32 %v2651, 0.0
    %v2684 = vmax.f32 %v2652, 0.0
    %v2685 = vmax.f32 %v2653, 0.0
    %v2686 = vmax.f32 %v2654, 0.0
    %v2687 = vmax.f32 %v2655, 0.0
    %v2688 = vmax.f32 %v2656, 0.0
    %v2689 = vmax.f32 %v2657, 0.0
    %v2690 = vmax.f32 %v2658, 0.0
    %v2691 = vmax.f32 %v2659, 0.0
    %v2692 = vmax.f32 %v2660, 0.0
    %v2693 = vmax.f32 %v2661, 0.0
    %v2694 = vmax.f32 %v2662, 0.0
    %v2695 = vmax.f32 %v2663, 0.0
    %v2696 = vmax.f32 %v2664, 0.0
    %v2697 = vmax.f32 %v2665, 0.0
    %v2698 = vmax.f32 %v2666, 0.0
    %v2699 = vmax.f32 %v2667, 0.0
    %v2700 = vmax.f32 %v2668, 0.0
    %v2701 = vmax.f32 %v2669, 0.0
    %v2702 = vmax.f32 %v2670, 0.0
    %v2703 = vmax.f32 %v2671, 0.0
    %v2704 = vmax.f32 %v2672, 0.0
    %v2705 = vmax.f32 %v2673, 0.0
    %v2706 = vmax.f32 %v2674, 0.0
    %v2707 = vmax.f32 %v2675, 0.0
    %v2708 = vmax.f32 %v2676, 0.0
    %v2709 = vmax.f32 %v2677, 0.0
    %v2710 = vmax.f32 %v2678, 0.0
    %v2711 = vmax.f32 %v2679, 0.0
    %v2712 = vmax.f32 %v2680, 0.0
    %v2713 = vmax.f32 %v2681, 0.0
    %v2714 = vmax.f32 %v2682, 0.0
    %v2715 = vsel %vm185, %v2683, 0.0
    %2716 = vadd.xlane.f32.xlu0 %v2715
    %v2717 = vpop.xlane.xlu0 %2716
    %v2718 = vsel %vm185, %v2684, 0.0
    %2719 = vadd.xlane.f32.xlu0 %v2718
    %v2720 = vpop.xlane.xlu0 %2719
    %v2721 = vsel %vm185, %v2685, 0.0
    %2722 = vadd.xlane.f32.xlu0 %v2721
    %v2723 = vpop.xlane.xlu0 %2722
    %v2724 = vsel %vm185, %v2686, 0.0
    %2725 = vadd.xlane.f32.xlu0 %v2724
    %v2726 = vpop.xlane.xlu0 %2725
    %v2727 = vsel %vm185, %v2687, 0.0
    %2728 = vadd.xlane.f32.xlu0 %v2727
    %v2729 = vpop.xlane.xlu0 %2728
    %v2730 = vsel %vm185, %v2688, 0.0
    %2731 = vadd.xlane.f32.xlu0 %v2730
    %v2732 = vpop.xlane.xlu0 %2731
    %v2733 = vsel %vm185, %v2689, 0.0
    %2734 = vadd.xlane.f32.xlu0 %v2733
    %v2735 = vpop.xlane.xlu0 %2734
    %v2736 = vsel %vm185, %v2690, 0.0
    %2737 = vadd.xlane.f32.xlu0 %v2736
    %v2738 = vpop.xlane.xlu0 %2737
    %v2739 = vsel %vm185, %v2691, 0.0
    %2740 = vadd.xlane.f32.xlu0 %v2739
    %v2741 = vpop.xlane.xlu0 %2740
    %v2742 = vsel %vm185, %v2692, 0.0
    %2743 = vadd.xlane.f32.xlu0 %v2742
    %v2744 = vpop.xlane.xlu0 %2743
    %v2745 = vsel %vm185, %v2693, 0.0
    %2746 = vadd.xlane.f32.xlu0 %v2745
    %v2747 = vpop.xlane.xlu0 %2746
    %v2748 = vsel %vm185, %v2694, 0.0
    %2749 = vadd.xlane.f32.xlu0 %v2748
    %v2750 = vpop.xlane.xlu0 %2749
    %v2751 = vsel %vm185, %v2695, 0.0
    %2752 = vadd.xlane.f32.xlu0 %v2751
    %v2753 = vpop.xlane.xlu0 %2752
    %v2754 = vsel %vm185, %v2696, 0.0
    %2755 = vadd.xlane.f32.xlu0 %v2754
    %v2756 = vpop.xlane.xlu0 %2755
    %v2757 = vsel %vm185, %v2697, 0.0
    %2758 = vadd.xlane.f32.xlu0 %v2757
    %v2759 = vpop.xlane.xlu0 %2758
    %v2760 = vsel %vm185, %v2698, 0.0
    %2761 = vadd.xlane.f32.xlu0 %v2760
    %v2762 = vpop.xlane.xlu0 %2761
    %v2763 = vsel %vm185, %v2699, 0.0
    %2764 = vadd.xlane.f32.xlu0 %v2763
    %v2765 = vpop.xlane.xlu0 %2764
    %v2766 = vsel %vm185, %v2700, 0.0
    %2767 = vadd.xlane.f32.xlu0 %v2766
    %v2768 = vpop.xlane.xlu0 %2767
    %v2769 = vsel %vm185, %v2701, 0.0
    %2770 = vadd.xlane.f32.xlu0 %v2769
    %v2771 = vpop.xlane.xlu0 %2770
    %v2772 = vsel %vm185, %v2702, 0.0
    %2773 = vadd.xlane.f32.xlu0 %v2772
    %v2774 = vpop.xlane.xlu0 %2773
    %v2775 = vsel %vm185, %v2703, 0.0
    %2776 = vadd.xlane.f32.xlu0 %v2775
    %v2777 = vpop.xlane.xlu0 %2776
    %v2778 = vsel %vm185, %v2704, 0.0
    %2779 = vadd.xlane.f32.xlu0 %v2778
    %v2780 = vpop.xlane.xlu0 %2779
    %v2781 = vsel %vm185, %v2705, 0.0
    %2782 = vadd.xlane.f32.xlu0 %v2781
    %v2783 = vpop.xlane.xlu0 %2782
    %v2784 = vsel %vm185, %v2706, 0.0
    %2785 = vadd.xlane.f32.xlu0 %v2784
    %v2786 = vpop.xlane.xlu0 %2785
    %v2787 = vsel %vm185, %v2707, 0.0
    %2788 = vadd.xlane.f32.xlu0 %v2787
    %v2789 = vpop.xlane.xlu0 %2788
    %v2790 = vsel %vm185, %v2708, 0.0
    %2791 = vadd.xlane.f32.xlu0 %v2790
    %v2792 = vpop.xlane.xlu0 %2791
    %v2793 = vsel %vm185, %v2709, 0.0
    %2794 = vadd.xlane.f32.xlu0 %v2793
    %v2795 = vpop.xlane.xlu0 %2794
    %v2796 = vsel %vm185, %v2710, 0.0
    %2797 = vadd.xlane.f32.xlu0 %v2796
    %v2798 = vpop.xlane.xlu0 %2797
    %v2799 = vsel %vm185, %v2711, 0.0
    %2800 = vadd.xlane.f32.xlu0 %v2799
    %v2801 = vpop.xlane.xlu0 %2800
    %v2802 = vsel %vm185, %v2712, 0.0
    %2803 = vadd.xlane.f32.xlu0 %v2802
    %v2804 = vpop.xlane.xlu0 %2803
    %v2805 = vsel %vm185, %v2713, 0.0
    %2806 = vadd.xlane.f32.xlu0 %v2805
    %v2807 = vpop.xlane.xlu0 %2806
    %v2808 = vsel %vm185, %v2714, 0.0
    %2809 = vadd.xlane.f32.xlu0 %v2808
    %v2810 = vpop.xlane.xlu0 %2809
    %v2811 = vrcp.pop 8.0
    %v2812 = vmul.f32 %v2717, %v2811
    %v2813 = vmul.f32 %v2720, %v2811
    %v2814 = vmul.f32 %v2723, %v2811
    %v2815 = vmul.f32 %v2726, %v2811
    %v2816 = vmul.f32 %v2729, %v2811
    %v2817 = vmul.f32 %v2732, %v2811
    %v2818 = vmul.f32 %v2735, %v2811
    %v2819 = vmul.f32 %v2738, %v2811
    %v2820 = vmul.f32 %v2741, %v2811
    %v2821 = vmul.f32 %v2744, %v2811
    %v2822 = vmul.f32 %v2747, %v2811
    %v2823 = vmul.f32 %v2750, %v2811
    %v2824 = vmul.f32 %v2753, %v2811
    %v2825 = vmul.f32 %v2756, %v2811
    %v2826 = vmul.f32 %v2759, %v2811
    %v2827 = vmul.f32 %v2762, %v2811
    %v2828 = vmul.f32 %v2765, %v2811
    %v2829 = vmul.f32 %v2768, %v2811
    %v2830 = vmul.f32 %v2771, %v2811
    %v2831 = vmul.f32 %v2774, %v2811
    %v2832 = vmul.f32 %v2777, %v2811
    %v2833 = vmul.f32 %v2780, %v2811
    %v2834 = vmul.f32 %v2783, %v2811
    %v2835 = vmul.f32 %v2786, %v2811
    %v2836 = vmul.f32 %v2789, %v2811
    %v2837 = vmul.f32 %v2792, %v2811
    %v2838 = vmul.f32 %v2795, %v2811
    %v2839 = vmul.f32 %v2798, %v2811
    %v2840 = vmul.f32 %v2801, %v2811
    %v2841 = vmul.f32 %v2804, %v2811
    %v2842 = vmul.f32 %v2807, %v2811
    %v2843 = vmul.f32 %v2810, %v2811
    %v2844 = vld [vmem:[%s7] sm:$0xff]
    %v2845 = vld [vmem:[%s7 + $0x8] sm:$0xff]
    %v2846 = vld [vmem:[%s7 + $0x10] sm:$0xff]
    %v2847 = vld [vmem:[%s7 + $0x18] sm:$0xff]
    %v2848 = vld [vmem:[%s8] sm:$0x1]
    %v2850 = vlaneseq
    %v2851 = vshrl.u32 %v2850, 7
    %v2852 = vsub.s32 0, %v2851
    %v2853 = vrot.slane %v2848, %v2852
    %v2887 = vlaneseq
    %v2888 = vand.u32 %v2887, 127
    %v2889 = vlaneseq
    %v2890 = vshrl.u32 %v2889, 7
    %v2891 = vsub.s32 %v2888, %v2890
    %v2892 = vrot.slane %v2812, %v2891
    %v2893 = vadd.s32 %v2888, 4294967288
    %v2894 = vlaneseq
    %v2895 = vshrl.u32 %v2894, 7
    %v2896 = vsub.s32 %v2893, %v2895
    %v2897 = vrot.slane %v2813, %v2896
    %vm2898 = vcmask 130112
    %v2899 = vsel %vm2898, %v2897, %v2892
    %v2900 = vadd.s32 %v2888, 4294967280
    %v2901 = vlaneseq
    %v2902 = vshrl.u32 %v2901, 7
    %v2903 = vsub.s32 %v2900, %v2902
    %v2904 = vrot.slane %v2814, %v2903
    %vm2905 = vcmask 195712
    %v2906 = vsel %vm2905, %v2904, %v2899
    %v2907 = vadd.s32 %v2888, 4294967272
    %v2908 = vlaneseq
    %v2909 = vshrl.u32 %v2908, 7
    %v2910 = vsub.s32 %v2907, %v2909
    %v2911 = vrot.slane %v2815, %v2910
    %vm2912 = vcmask 261312
    %v2913 = vsel %vm2912, %v2911, %v2906
    %v2914 = vlaneseq
    %v2915 = vshrl.u32 %v2914, 7
    %v2916 = vsub.s32 %v2888, %v2915
    %v2917 = vrot.slane %v2816, %v2916
    %v2918 = vlaneseq
    %v2919 = vshrl.u32 %v2918, 7
    %v2920 = vsub.s32 %v2893, %v2919
    %v2921 = vrot.slane %v2817, %v2920
    %v2922 = vsel %vm2898, %v2921, %v2917
    %v2923 = vlaneseq
    %v2924 = vshrl.u32 %v2923, 7
    %v2925 = vsub.s32 %v2900, %v2924
    %v2926 = vrot.slane %v2818, %v2925
    %v2927 = vsel %vm2905, %v2926, %v2922
    %v2928 = vlaneseq
    %v2929 = vshrl.u32 %v2928, 7
    %v2930 = vsub.s32 %v2907, %v2929
    %v2931 = vrot.slane %v2819, %v2930
    %v2932 = vsel %vm2912, %v2931, %v2927
    %v2933 = vlaneseq
    %v2934 = vshrl.u32 %v2933, 7
    %v2935 = vsub.s32 %v2888, %v2934
    %v2936 = vrot.slane %v2820, %v2935
    %v2937 = vlaneseq
    %v2938 = vshrl.u32 %v2937, 7
    %v2939 = vsub.s32 %v2893, %v2938
    %v2940 = vrot.slane %v2821, %v2939
    %v2941 = vsel %vm2898, %v2940, %v2936
    %v2942 = vlaneseq
    %v2943 = vshrl.u32 %v2942, 7
    %v2944 = vsub.s32 %v2900, %v2943
    %v2945 = vrot.slane %v2822, %v2944
    %v2946 = vsel %vm2905, %v2945, %v2941
    %v2947 = vlaneseq
    %v2948 = vshrl.u32 %v2947, 7
    %v2949 = vsub.s32 %v2907, %v2948
    %v2950 = vrot.slane %v2823, %v2949
    %v2951 = vsel %vm2912, %v2950, %v2946
    %v2952 = vlaneseq
    %v2953 = vshrl.u32 %v2952, 7
    %v2954 = vsub.s32 %v2888, %v2953
    %v2955 = vrot.slane %v2824, %v2954
    %v2956 = vlaneseq
    %v2957 = vshrl.u32 %v2956, 7
    %v2958 = vsub.s32 %v2893, %v2957
    %v2959 = vrot.slane %v2825, %v2958
    %v2960 = vsel %vm2898, %v2959, %v2955
    %v2961 = vlaneseq
    %v2962 = vshrl.u32 %v2961, 7
    %v2963 = vsub.s32 %v2900, %v2962
    %v2964 = vrot.slane %v2826, %v2963
    %v2965 = vsel %vm2905, %v2964, %v2960
    %v2966 = vlaneseq
    %v2967 = vshrl.u32 %v2966, 7
    %v2968 = vsub.s32 %v2907, %v2967
    %v2969 = vrot.slane %v2827, %v2968
    %v2970 = vsel %vm2912, %v2969, %v2965
    %v2971 = vlaneseq
    %v2972 = vshrl.u32 %v2971, 7
    %v2973 = vsub.s32 %v2888, %v2972
    %v2974 = vrot.slane %v2828, %v2973
    %v2975 = vlaneseq
    %v2976 = vshrl.u32 %v2975, 7
    %v2977 = vsub.s32 %v2893, %v2976
    %v2978 = vrot.slane %v2829, %v2977
    %v2979 = vsel %vm2898, %v2978, %v2974
    %v2980 = vlaneseq
    %v2981 = vshrl.u32 %v2980, 7
    %v2982 = vsub.s32 %v2900, %v2981
    %v2983 = vrot.slane %v2830, %v2982
    %v2984 = vsel %vm2905, %v2983, %v2979
    %v2985 = vlaneseq
    %v2986 = vshrl.u32 %v2985, 7
    %v2987 = vsub.s32 %v2907, %v2986
    %v2988 = vrot.slane %v2831, %v2987
    %v2989 = vsel %vm2912, %v2988, %v2984
    %v2990 = vlaneseq
    %v2991 = vshrl.u32 %v2990, 7
    %v2992 = vsub.s32 %v2888, %v2991
    %v2993 = vrot.slane %v2832, %v2992
    %v2994 = vlaneseq
    %v2995 = vshrl.u32 %v2994, 7
    %v2996 = vsub.s32 %v2893, %v2995
    %v2997 = vrot.slane %v2833, %v2996
    %v2998 = vsel %vm2898, %v2997, %v2993
    %v2999 = vlaneseq
    %v3000 = vshrl.u32 %v2999, 7
    %v3001 = vsub.s32 %v2900, %v3000
    %v3002 = vrot.slane %v2834, %v3001
    %v3003 = vsel %vm2905, %v3002, %v2998
    %v3004 = vlaneseq
    %v3005 = vshrl.u32 %v3004, 7
    %v3006 = vsub.s32 %v2907, %v3005
    %v3007 = vrot.slane %v2835, %v3006
    %v3008 = vsel %vm2912, %v3007, %v3003
    %v3009 = vlaneseq
    %v3010 = vshrl.u32 %v3009, 7
    %v3011 = vsub.s32 %v2888, %v3010
    %v3012 = vrot.slane %v2836, %v3011
    %v3013 = vlaneseq
    %v3014 = vshrl.u32 %v3013, 7
    %v3015 = vsub.s32 %v2893, %v3014
    %v3016 = vrot.slane %v2837, %v3015
    %v3017 = vsel %vm2898, %v3016, %v3012
    %v3018 = vlaneseq
    %v3019 = vshrl.u32 %v3018, 7
    %v3020 = vsub.s32 %v2900, %v3019
    %v3021 = vrot.slane %v2838, %v3020
    %v3022 = vsel %vm2905, %v3021, %v3017
    %v3023 = vlaneseq
    %v3024 = vshrl.u32 %v3023, 7
    %v3025 = vsub.s32 %v2907, %v3024
    %v3026 = vrot.slane %v2839, %v3025
    %v3027 = vsel %vm2912, %v3026, %v3022
    %v3028 = vlaneseq
    %v3029 = vshrl.u32 %v3028, 7
    %v3030 = vsub.s32 %v2888, %v3029
    %v3031 = vrot.slane %v2840, %v3030
    %v3032 = vlaneseq
    %v3033 = vshrl.u32 %v3032, 7
    %v3034 = vsub.s32 %v2893, %v3033
    %v3035 = vrot.slane %v2841, %v3034
    %v3036 = vsel %vm2898, %v3035, %v3031
    %v3037 = vlaneseq
    %v3038 = vshrl.u32 %v3037, 7
    %v3039 = vsub.s32 %v2900, %v3038
    %v3040 = vrot.slane %v2842, %v3039
    %v3041 = vsel %vm2905, %v3040, %v3036
    %v3042 = vlaneseq
    %v3043 = vshrl.u32 %v3042, 7
    %v3044 = vsub.s32 %v2907, %v3043
    %v3045 = vrot.slane %v2843, %v3044
    %v3046 = vsel %vm2912, %v3045, %v3041
    %vm3047 = vcmask 1041409
    %v3048 = vsel %vm3047, %v2932, %v2913
    %vm3049 = vcmask 1042434
    %v3050 = vsel %vm3049, %v2951, %v3048
    %vm3051 = vcmask 1043459
    %v3052 = vsel %vm3051, %v2970, %v3050
    %vm3053 = vcmask 1044484
    %v3054 = vsel %vm3053, %v2989, %v3052
    %vm3055 = vcmask 1045509
    %v3056 = vsel %vm3055, %v3008, %v3054
    %vm3057 = vcmask 1046534
    %v3058 = vsel %vm3057, %v3027, %v3056
    %vm3059 = vcmask 1047559
    %v3060 = vsel %vm3059, %v3046, %v3058
    %v3061 = vsel %vm1130, %v3060, 0
    %3063 = vmatprep.subr.mxu0 0.0
    %3064 = vmatpush1.msra.mxu0 %v2844
    %3065 = vmatprep.subr.mxu0 0.0
    %3066 = vmatpush1.msra.mxu0 %v2845
    %3067 = vmatprep.subr.mxu0 0.0
    %3068 = vmatpush1.msra.mxu0 %v2846
    %3069 = vmatprep.subr.mxu0 0.0
    %3070 = vmatpush1.msra.mxu0 %v2847
    %3071 = vmatprep.subr.mxu0 0.0
    %3072 = vmatpush1.msra.mxu0 0.0
    %3073 = vmatprep.subr.mxu0 0.0
    %3074 = vmatpush1.msra.mxu0 0.0
    %3075 = vmatprep.subr.mxu0 0.0
    %3076 = vmatpush1.msra.mxu0 0.0
    %3077 = vmatprep.subr.mxu0 0.0
    %3078 = vmatpush1.msra.mxu0 0.0
    %3079 = vmatprep.subr.mxu0 0.0
    %3080 = vmatpush1.msra.mxu0 0.0
    %3081 = vmatprep.subr.mxu0 0.0
    %3082 = vmatpush1.msra.mxu0 0.0
    %3083 = vmatprep.subr.mxu0 0.0
    %3084 = vmatpush1.msra.mxu0 0.0
    %3085 = vmatprep.subr.mxu0 0.0
    %3086 = vmatpush1.msra.mxu0 0.0
    %3087 = vmatprep.subr.mxu0 0.0
    %3088 = vmatpush1.msra.mxu0 0.0
    %3089 = vmatprep.subr.mxu0 0.0
    %3090 = vmatpush1.msra.mxu0 0.0
    %3091 = vmatprep.subr.mxu0 0.0
    %3092 = vmatpush1.msra.mxu0 0.0
    %3093 = vmatprep.subr.mxu0 0.0
    %3094 = vmatpush1.msra.mxu0 0.0
    %3095 = vmatprep.subr.mxu0 0.0
    %3096 = vmatpush1.msra.mxu0 0.0
    %3097 = vmatprep.subr.mxu0 0.0
    %3098 = vmatpush1.msra.mxu0 0.0
    %3099 = vmatprep.subr.mxu0 0.0
    %3100 = vmatpush1.msra.mxu0 0.0
    %3101 = vmatprep.subr.mxu0 0.0
    %3102 = vmatpush1.msra.mxu0 0.0
    %3103 = vmatprep.subr.mxu0 0.0
    %3104 = vmatpush1.msra.mxu0 0.0
    %3105 = vmatprep.subr.mxu0 0.0
    %3106 = vmatpush1.msra.mxu0 0.0
    %3107 = vmatprep.subr.mxu0 0.0
    %3108 = vmatpush1.msra.mxu0 0.0
    %3109 = vmatprep.subr.mxu0 0.0
    %3110 = vmatpush1.msra.mxu0 0.0
    %3111 = vmatprep.subr.mxu0 0.0
    %3112 = vmatpush1.msra.mxu0 0.0
    %3113 = vmatprep.subr.mxu0 0.0
    %3114 = vmatpush1.msra.mxu0 0.0
    %3115 = vmatprep.subr.mxu0 0.0
    %3116 = vmatpush1.msra.mxu0 0.0
    %3117 = vmatprep.subr.mxu0 0.0
    %3118 = vmatpush1.msra.mxu0 0.0
    %3119 = vmatprep.subr.mxu0 0.0
    %3120 = vmatpush1.msra.mxu0 0.0
    %3121 = vmatprep.subr.mxu0 0.0
    %3122 = vmatpush1.msra.mxu0 0.0
    %3123 = vmatprep.subr.mxu0 0.0
    %3124 = vmatpush1.msra.mxu0 0.0
    %3125 = vmatprep.subr.mxu0 0.0
    %3126 = vmatpush1.msra.mxu0 0.0
    %3127 = vmatprep.mubr.f32.mxu0 0.0
    %3128 = vmatmul.mubr.f32.gmra.mrb[0].mxu0 %v3061
    %v3129 = vpop.f32.mrb[0].mxu0
    %v3130 = vadd.f32 %v2853, %v3129
    %v3131 = vpop.f32.mrb[0].mxu0
    %3132 = vdwg.mxu0
    %3133 = vst [vmem:[#allocation2] sm:$0xff] %v3130
    // Predicated region
    $region38: #{tpu_custom_call.1} parent=1 // pred_check
      _
    $region39: #{tpu_custom_call.1} parent=1 // pred_check_branch
      %3135 = sbr.rel (0) target = $region41
    $region40: #{tpu_custom_call.1} parent=1 // pred_region
      %s3137 = ssub.s32 128, 128
      %3138 = vsyncadd [#allocation3], %s3137
      %s3140 = sshll.u32 [#allocation2], 4
      %s3141 = int_to_ptr.vmem [resolvable:$true] %s3140
      %3143 = dma.vmem_to_hbm [thread:$0]  %s3141, 128, %s9, [#allocation3]
    $region41: #{tpu_custom_call.1} parent=1 // pred_fallthru
      _
    // Predicated region
    $region42: #{tpu_custom_call.1} parent=1 // pred_check
      _
    $region43: #{tpu_custom_call.1} parent=1 // pred_check_branch
      %3145 = sbr.rel (0) target = $region45
    $region44: #{tpu_custom_call.1} parent=1 // pred_region
      %3146 = dma.done [#allocation3], 128
    $region45: #{tpu_custom_call.1} parent=1 // pred_fallthru
      _
    %3147 = vsyncpa [#allocation3], 1

</llo_original>
